<compile_context>
chip_gen: v7x
topology: tpu7x:2x2x1
jax: 0.10.0
libtpu: 0.0.40
codegen_flags: <defaults>
</compile_context>

<pallas_src>
import numpy as np
import jax
import jax.numpy as jnp
from jax.experimental import pallas as pl
from jax.experimental.pallas import tpu as pltpu

LANE = 128


def _round_up(v, m):
    return ((v + m - 1) // m) * m


# ----------------------------------------------------------------------------
# Kernel
# ----------------------------------------------------------------------------
def highway_kernel(x_ref, w_ref, b_ref, wf_ref, bf_ref, out_ref):
    """One batch tile per grid step.

    x_ref : [TB, Dp]         f32 activations (current batch tile, lane-padded)
    w_ref : [L, Dp, 2*Dp]    bf16 fused weights: cols [0:Dp]=gate, [Dp:2Dp]=nonlinear
    b_ref : [L, 1, 2*Dp]     f32 fused biases
    wf_ref: [Dp, DoutP]      bf16 final linear weight (lane-padded)
    bf_ref: [1, DoutP]       f32 final linear bias (lane-padded)
    out_ref: [TB, DoutP]
    """
    Dp = x_ref.shape[1]
    n_layers = w_ref.shape[0]

    x = x_ref[...].astype(jnp.float32)                                  # [TB, Dp]

    def layer_step(l, x):
        # TODO(synk): Dropout(0.2) is a no-op here (eval mode); training-mode
        # dropout would need pltpu.prng_seed / prng_random_bits masking.
        w = w_ref[l]                                                     # [Dp, 2Dp] bf16
        b = b_ref[l]                                                     # [1, 2Dp]  f32
        pre = jnp.dot(x.astype(jnp.bfloat16), w,
                      preferred_element_type=jnp.float32) + b            # [TB, 2Dp] f32
        gate = jax.nn.sigmoid(pre[:, :Dp])        # lane-aligned static view
        nonlinear = jnp.maximum(pre[:, Dp:], 0.0)  # ReLU, lane-aligned static view
        # Highway blend: gate*nl + (1-gate)*x  ==  x + gate*(nl - x)
        return x + gate * (nonlinear - x)

    if n_layers <= 8:
        # Small layer count: full unroll so the LLO scheduler sees everything.
        for l in range(n_layers):
            x = layer_step(l, x)
    else:
        # Large layer count: bound live ranges / code size.
        x = jax.lax.fori_loop(0, n_layers, layer_step, x)

    out = jnp.dot(x.astype(jnp.bfloat16), wf_ref[...],
                  preferred_element_type=jnp.float32) + bf_ref[...]
    out_ref[...] = out.astype(out_ref.dtype)


# ----------------------------------------------------------------------------
# One-time parameter prepack (OUT of the hot path)
# ----------------------------------------------------------------------------
def prepack_params(wg, bg, wn, bn, wf, bf):
    """Fuse gate+nonlinear weights, lane-pad all dims to multiples of 128,
    cast matmul operands to bf16.  Run once at init."""
    L, D, _ = wg.shape
    Dout = wf.shape[1]
    Dp = _round_up(D, LANE)
    Doutp = _round_up(Dout, LANE)

    def pad_w(w):   # [L, D, D] -> [L, Dp, Dp]
        return jnp.pad(w, ((0, 0), (0, Dp - D), (0, Dp - D)))

    def pad_b(b):   # [L, 1, D] -> [L, 1, Dp]
        return jnp.pad(b, ((0, 0), (0, 0), (0, Dp - D)))

    w_fused = jnp.concatenate([pad_w(wg), pad_w(wn)], axis=-1).astype(jnp.bfloat16)  # [L,Dp,2Dp]
    b_fused = jnp.concatenate([pad_b(bg), pad_b(bn)], axis=-1).astype(jnp.float32)   # [L,1,2Dp]
    wf_p = jnp.pad(wf, ((0, Dp - D), (0, Doutp - Dout))).astype(jnp.bfloat16)        # [Dp,Doutp]
    bf_p = jnp.pad(bf, ((0, 0), (0, Doutp - Dout))).astype(jnp.float32)              # [1,Doutp]

    return {"w_fused": w_fused, "b_fused": b_fused, "wf": wf_p, "bf": bf_p,
            "D": D, "Dout": Dout}


# ----------------------------------------------------------------------------
# Forward wrapper
# ----------------------------------------------------------------------------
def highway_forward(x, packed, *, tile_b=512):
    """x: [B, D] f32.  `packed` comes from prepack_params (called once)."""
    w_fused, b_fused = packed["w_fused"], packed["b_fused"]
    wf_p, bf_p = packed["wf"], packed["bf"]
    B, D = x.shape
    assert D == packed["D"], "input feature dim mismatch with prepacked params"
    L, Dp, _ = w_fused.shape
    Doutp = wf_p.shape[1]
    Dout = packed["Dout"]

    # ---- batch tile: as big as VMEM allows, >= 2 grid steps when batch allows ----
    tb = max(8, (min(int(tile_b), 1024) // 8) * 8)
    B8 = _round_up(B, 8)
    if B8 <= tb:
        # Split into (at least) two tiles so the "parallel" axis can shard
        # across both TensorCores on v7x.
        tb = _round_up((B8 + 1) // 2, 8) if B8 >= 16 else B8

    # ---- VMEM plan derived from actual buffer sizes, clamped to chip capacity ----
    const_bytes = (w_fused.size * 2 + b_fused.size * 4 + wf_p.size * 2 + bf_p.size * 4)

    def plan_bytes(tb_, const_bufs):
        act = 2 * tb_ * Dp * 4 + 2 * tb_ * Doutp * 4      # double-buffered x / out tiles
        scratch = 4 * tb_ * (2 * Dp) * 4                  # pre/gate/nl temporaries headroom
        return const_bufs * const_bytes + act + scratch

    try:
        vmem_cap = pltpu.get_tpu_info().vmem_capacity_bytes
    except Exception:
        vmem_cap = 64 * 1024 * 1024                       # v7x-safe fallback
    budget = int(vmem_cap * 0.9)
    # TODO(synk): if const_bytes alone exceeds `budget` (very large D*L), stop keeping
    # all layers resident and stream one layer's weights per step instead
    # (pltpu.emit_pipeline / manual make_async_copy double-buffering).
    while tb > 8 and plan_bytes(tb, 2) > budget:
        tb = max(8, ((tb // 2) // 8) * 8)

    B_p = _round_up(B, tb)
    grid = (B_p // tb,)
    x_p = jnp.pad(x, ((0, B_p - B), (0, Dp - D))).astype(jnp.float32)

    out_shape = jax.ShapeDtypeStruct((B_p, Doutp), jnp.float32)

    def run(single_buffer_consts):
        const_bufs = 1 if single_buffer_consts else 2
        kw = {"pipeline_mode": pl.Buffered(1)} if single_buffer_consts else {}
        in_specs = [
            pl.BlockSpec((tb, Dp), lambda i: (i, 0)),                   # x tile (pipelined)
            pl.BlockSpec(w_fused.shape, lambda i: (0, 0, 0), **kw),     # weights (VMEM-resident)
            pl.BlockSpec(b_fused.shape, lambda i: (0, 0, 0), **kw),
            pl.BlockSpec(wf_p.shape, lambda i: (0, 0), **kw),
            pl.BlockSpec(bf_p.shape, lambda i: (0, 0), **kw),
        ]
        vmem_limit = int(min(budget,
                             max(plan_bytes(tb, const_bufs) + (4 << 20), 32 << 20)))
        return pl.pallas_call(
            highway_kernel,
            out_shape=out_shape,
            grid_spec=pltpu.PrefetchScalarGridSpec(
                num_scalar_prefetch=0,
                grid=grid,
                in_specs=in_specs,
                out_specs=pl.BlockSpec((tb, Doutp), lambda i: (i, 0)),
            ),
            compiler_params=pltpu.CompilerParams(
                dimension_semantics=("parallel",),
                vmem_limit_bytes=vmem_limit,
            ),
        )(x_p, w_fused, b_fused, wf_p, bf_p)

    try:
        out = run(single_buffer_consts=True)
    except Exception:
        # Fallback for JAX builds that reject pl.Buffered(1) on pallas_call inputs.
        out = run(single_buffer_consts=False)

    return out[:B, :Dout]


# ----------------------------------------------------------------------------
# Parameter init (mirrors the PyTorch module) + pure-JAX reference
# ----------------------------------------------------------------------------
def init_params(key, input_dim, output_dim, n_layers):
    """nn.Linear-style init (uniform(-1/sqrt(in), 1/sqrt(in))); weights stored
    pre-transposed as [in, out].  Gate biases zeroed as in the PyTorch __init__."""
    bound = 1.0 / float(np.sqrt(input_dim))
    kn, kg, kf = jax.random.split(key, 3)

    kn_w = jax.random.split(kn, 2 * n_layers)
    wn = jnp.stack([
        jax.random.uniform(kn_w[i], (input_dim, input_dim), jnp.float32, -bound, bound)
        for i in range(n_layers)])                                   # [L, D, D]
    bn = jnp.stack([
        jax.random.uniform(kn_w[n_layers + i], (1, input_dim), jnp.float32, -bound, bound)
        for i in range(n_layers)])                                   # [L, 1, D]

    kg_w = jax.random.split(kg, n_layers)
    wg = jnp.stack([
        jax.random.uniform(kg_w[i], (input_dim, input_dim), jnp.float32, -bound, bound)
        for i in range(n_layers)])                                   # [L, D, D]
    bg = jnp.zeros((n_layers, 1, input_dim), jnp.float32)            # gate bias = 0

    kf_w, kf_b = jax.random.split(kf)
    wf = jax.random.uniform(kf_w, (input_dim, output_dim), jnp.float32, -bound, bound)
    bf = jax.random.uniform(kf_b, (1, output_dim), jnp.float32, -bound, bound)
    return wg, bg, wn, bn, wf, bf


def reference_forward(x, wg, bg, wn, bn, wf, bf):
    """Pure-JAX (f32) reference."""
    h = x
    for l in range(wg.shape[0]):
        gate = jax.nn.sigmoid(h @ wg[l] + bg[l])
        nonlinear = jnp.maximum(h @ wn[l] + bn[l], 0.0)
        h = gate * nonlinear + (1.0 - gate) * h
    return h @ wf + bf


if __name__ == "__main__":
    B, input_dim, output_dim, n_layers = 32, 32, 16, 3

    key = jax.random.PRNGKey(0)
    kx, kp = jax.random.split(key)
    x = jax.random.normal(kx, (B, input_dim), jnp.float32)
    raw_params = init_params(kp, input_dim, output_dim, n_layers)

    # One-time prepack (fuse + lane-pad + bf16 cast) -- out of the hot path.
    packed = prepack_params(*raw_params)

    # Default tile picker: B=32 -> tb=16, grid=(2,)  (>=2 parallel grid steps).
    out = highway_forward(x, packed)
    out = jax.block_until_ready(out)

    ref = reference_forward(x, *raw_params)
    assert out.shape == (B, output_dim)
    # bf16 matmul inputs (f32 accumulate) -> loose-ish tolerance vs f32 reference.
    err = float(jnp.max(jnp.abs(out - ref)))
    assert jnp.allclose(out, ref, atol=5e-2, rtol=5e-2), f"max abs err {err}"

    print("KERNEL_OK")
</pallas_src>

<mosaic_0001>
module attributes {stable_mosaic.version = 11 : i64} {
  func.func @highway_kernel(%arg0: i32, %arg1: memref<16x128xf32, #tpu.memory_space<vmem>>, %arg2: memref<3x128x256xbf16, #tpu.memory_space<vmem>>, %arg3: memref<3x1x256xf32, #tpu.memory_space<vmem>>, %arg4: memref<128x128xbf16, #tpu.memory_space<vmem>>, %arg5: memref<1x128xf32, #tpu.memory_space<vmem>>, %arg6: memref<16x128xf32, #tpu.memory_space<vmem>>) attributes {dimension_semantics = [#tpu.dimension_semantics<parallel>], iteration_bounds = array<i64: 2>, scalar_prefetch = 0 : i64, scratch_operands = 0 : i64, tpu.core_type = #tpu.core_type<tc>, window_params = [{transform_indices = @transform_0, window_bounds = array<i64: 16, 128>}, {pipeline_mode = #tpu.pipeline_mode<synchronous>, transform_indices = @transform_1, window_bounds = array<i64: 3, 128, 256>}, {pipeline_mode = #tpu.pipeline_mode<synchronous>, transform_indices = @transform_2, window_bounds = array<i64: 3, 1, 256>}, {pipeline_mode = #tpu.pipeline_mode<synchronous>, transform_indices = @transform_3, window_bounds = array<i64: 128, 128>}, {pipeline_mode = #tpu.pipeline_mode<synchronous>, transform_indices = @transform_4, window_bounds = array<i64: 1, 128>}, {transform_indices = @transform_5, window_bounds = array<i64: 16, 128>}]} {
    %c0 = arith.constant 0 : index
    %c0_0 = arith.constant 0 : index
    %0 = vector.load %arg1[%c0, %c0_0] : memref<16x128xf32, #tpu.memory_space<vmem>>, vector<16x128xf32>
    %c0_1 = arith.constant 0 : index
    %c0_2 = arith.constant 0 : index
    %c0_3 = arith.constant 0 : index
    %1 = vector.load %arg2[%c0_1, %c0_2, %c0_3] : memref<3x128x256xbf16, #tpu.memory_space<vmem>>, vector<1x128x256xbf16>
    %2 = vector.shape_cast %1 : vector<1x128x256xbf16> to vector<128x256xbf16>
    %c0_4 = arith.constant 0 : index
    %c0_5 = arith.constant 0 : index
    %c0_6 = arith.constant 0 : index
    %3 = vector.load %arg3[%c0_4, %c0_5, %c0_6] : memref<3x1x256xf32, #tpu.memory_space<vmem>>, vector<1x1x256xf32>
    %4 = vector.shape_cast %3 : vector<1x1x256xf32> to vector<1x256xf32>
    %5 = arith.truncf %0 : vector<16x128xf32> to vector<16x128xbf16>
    %cst = arith.constant dense<0.000000e+00> : vector<16x256xf32>
    %6 = tpu.matmul %5, %2, %cst {dimension_numbers = #tpu.dot_dimension_numbers<[1], [0], [0], [1], [0, 0, 1, 1], [], []>} : vector<16x128xbf16>, vector<128x256xbf16>, vector<16x256xf32> -> vector<16x256xf32>
    %7 = vector.broadcast %4 : vector<1x256xf32> to vector<16x256xf32>
    %8 = arith.addf %6, %7 : vector<16x256xf32>
    %9 = vector.extract_strided_slice %8 {offsets = [0, 0], sizes = [16, 128], strides = [1, 1]} : vector<16x256xf32> to vector<16x128xf32>
    %10 = arith.negf %9 : vector<16x128xf32>
    %11 = math.exp %10 : vector<16x128xf32>
    %cst_7 = arith.constant 1.000000e+00 : f32
    %12 = vector.broadcast %cst_7 : f32 to vector<16x128xf32>
    %13 = arith.addf %12, %11 : vector<16x128xf32>
    %14 = arith.divf %12, %13 : vector<16x128xf32>
    %15 = vector.extract_strided_slice %8 {offsets = [0, 128], sizes = [16, 128], strides = [1, 1]} : vector<16x256xf32> to vector<16x128xf32>
    %cst_8 = arith.constant 0.000000e+00 : f32
    %16 = vector.broadcast %cst_8 : f32 to vector<16x128xf32>
    %17 = arith.maximumf %15, %16 : vector<16x128xf32>
    %18 = arith.subf %17, %0 : vector<16x128xf32>
    %19 = arith.mulf %14, %18 : vector<16x128xf32>
    %20 = arith.addf %0, %19 : vector<16x128xf32>
    %c1 = arith.constant 1 : index
    %c0_9 = arith.constant 0 : index
    %c0_10 = arith.constant 0 : index
    %21 = vector.load %arg2[%c1, %c0_9, %c0_10] : memref<3x128x256xbf16, #tpu.memory_space<vmem>>, vector<1x128x256xbf16>
    %22 = vector.shape_cast %21 : vector<1x128x256xbf16> to vector<128x256xbf16>
    %c1_11 = arith.constant 1 : index
    %c0_12 = arith.constant 0 : index
    %c0_13 = arith.constant 0 : index
    %23 = vector.load %arg3[%c1_11, %c0_12, %c0_13] : memref<3x1x256xf32, #tpu.memory_space<vmem>>, vector<1x1x256xf32>
    %24 = vector.shape_cast %23 : vector<1x1x256xf32> to vector<1x256xf32>
    %25 = arith.truncf %20 : vector<16x128xf32> to vector<16x128xbf16>
    %cst_14 = arith.constant dense<0.000000e+00> : vector<16x256xf32>
    %26 = tpu.matmul %25, %22, %cst_14 {dimension_numbers = #tpu.dot_dimension_numbers<[1], [0], [0], [1], [0, 0, 1, 1], [], []>} : vector<16x128xbf16>, vector<128x256xbf16>, vector<16x256xf32> -> vector<16x256xf32>
    %27 = vector.broadcast %24 : vector<1x256xf32> to vector<16x256xf32>
    %28 = arith.addf %26, %27 : vector<16x256xf32>
    %29 = vector.extract_strided_slice %28 {offsets = [0, 0], sizes = [16, 128], strides = [1, 1]} : vector<16x256xf32> to vector<16x128xf32>
    %30 = arith.negf %29 : vector<16x128xf32>
    %31 = math.exp %30 : vector<16x128xf32>
    %cst_15 = arith.constant 1.000000e+00 : f32
    %32 = vector.broadcast %cst_15 : f32 to vector<16x128xf32>
    %33 = arith.addf %32, %31 : vector<16x128xf32>
    %34 = arith.divf %32, %33 : vector<16x128xf32>
    %35 = vector.extract_strided_slice %28 {offsets = [0, 128], sizes = [16, 128], strides = [1, 1]} : vector<16x256xf32> to vector<16x128xf32>
    %cst_16 = arith.constant 0.000000e+00 : f32
    %36 = vector.broadcast %cst_16 : f32 to vector<16x128xf32>
    %37 = arith.maximumf %35, %36 : vector<16x128xf32>
    %38 = arith.subf %37, %20 : vector<16x128xf32>
    %39 = arith.mulf %34, %38 : vector<16x128xf32>
    %40 = arith.addf %20, %39 : vector<16x128xf32>
    %c2 = arith.constant 2 : index
    %c0_17 = arith.constant 0 : index
    %c0_18 = arith.constant 0 : index
    %41 = vector.load %arg2[%c2, %c0_17, %c0_18] : memref<3x128x256xbf16, #tpu.memory_space<vmem>>, vector<1x128x256xbf16>
    %42 = vector.shape_cast %41 : vector<1x128x256xbf16> to vector<128x256xbf16>
    %c2_19 = arith.constant 2 : index
    %c0_20 = arith.constant 0 : index
    %c0_21 = arith.constant 0 : index
    %43 = vector.load %arg3[%c2_19, %c0_20, %c0_21] : memref<3x1x256xf32, #tpu.memory_space<vmem>>, vector<1x1x256xf32>
    %44 = vector.shape_cast %43 : vector<1x1x256xf32> to vector<1x256xf32>
    %45 = arith.truncf %40 : vector<16x128xf32> to vector<16x128xbf16>
    %cst_22 = arith.constant dense<0.000000e+00> : vector<16x256xf32>
    %46 = tpu.matmul %45, %42, %cst_22 {dimension_numbers = #tpu.dot_dimension_numbers<[1], [0], [0], [1], [0, 0, 1, 1], [], []>} : vector<16x128xbf16>, vector<128x256xbf16>, vector<16x256xf32> -> vector<16x256xf32>
    %47 = vector.broadcast %44 : vector<1x256xf32> to vector<16x256xf32>
    %48 = arith.addf %46, %47 : vector<16x256xf32>
    %49 = vector.extract_strided_slice %48 {offsets = [0, 0], sizes = [16, 128], strides = [1, 1]} : vector<16x256xf32> to vector<16x128xf32>
    %50 = arith.negf %49 : vector<16x128xf32>
    %51 = math.exp %50 : vector<16x128xf32>
    %cst_23 = arith.constant 1.000000e+00 : f32
    %52 = vector.broadcast %cst_23 : f32 to vector<16x128xf32>
    %53 = arith.addf %52, %51 : vector<16x128xf32>
    %54 = arith.divf %52, %53 : vector<16x128xf32>
    %55 = vector.extract_strided_slice %48 {offsets = [0, 128], sizes = [16, 128], strides = [1, 1]} : vector<16x256xf32> to vector<16x128xf32>
    %cst_24 = arith.constant 0.000000e+00 : f32
    %56 = vector.broadcast %cst_24 : f32 to vector<16x128xf32>
    %57 = arith.maximumf %55, %56 : vector<16x128xf32>
    %58 = arith.subf %57, %40 : vector<16x128xf32>
    %59 = arith.mulf %54, %58 : vector<16x128xf32>
    %60 = arith.addf %40, %59 : vector<16x128xf32>
    %61 = arith.truncf %60 : vector<16x128xf32> to vector<16x128xbf16>
    %c0_25 = arith.constant 0 : index
    %c0_26 = arith.constant 0 : index
    %62 = vector.load %arg4[%c0_25, %c0_26] : memref<128x128xbf16, #tpu.memory_space<vmem>>, vector<128x128xbf16>
    %cst_27 = arith.constant dense<0.000000e+00> : vector<16x128xf32>
    %63 = tpu.matmul %61, %62, %cst_27 {dimension_numbers = #tpu.dot_dimension_numbers<[1], [0], [0], [1], [0, 0, 1, 1], [], []>} : vector<16x128xbf16>, vector<128x128xbf16>, vector<16x128xf32> -> vector<16x128xf32>
    %c0_28 = arith.constant 0 : index
    %c0_29 = arith.constant 0 : index
    %64 = vector.load %arg5[%c0_28, %c0_29] : memref<1x128xf32, #tpu.memory_space<vmem>>, vector<1x128xf32>
    %65 = vector.broadcast %64 : vector<1x128xf32> to vector<16x128xf32>
    %66 = arith.addf %63, %65 : vector<16x128xf32>
    %c0_30 = arith.constant 0 : index
    %c0_31 = arith.constant 0 : index
    %67 = vector.load %arg6[%c0_30, %c0_31] : memref<16x128xf32, #tpu.memory_space<vmem>>, vector<16x128xf32>
    tpu.vector_store %arg6[%c0_30, %c0_31], %66 {strides = array<i32>} : memref<16x128xf32, #tpu.memory_space<vmem>>, vector<16x128xf32>,
    return
  }
  func.func @transform_0(%arg0: i32) -> (i32, i32) {
    %c0_i32 = arith.constant 0 : i32
    %c0_i32_0 = arith.constant 0 : i32
    return %arg0, %c0_i32 : i32, i32
  }
  func.func @transform_1(%arg0: i32) -> (i32, i32, i32) {
    %c0_i32 = arith.constant 0 : i32
    %c0_i32_0 = arith.constant 0 : i32
    %c0_i32_1 = arith.constant 0 : i32
    %c0_i32_2 = arith.constant 0 : i32
    return %c0_i32, %c0_i32_0, %c0_i32_1 : i32, i32, i32
  }
  func.func @transform_2(%arg0: i32) -> (i32, i32, i32) {
    %c0_i32 = arith.constant 0 : i32
    %c0_i32_0 = arith.constant 0 : i32
    %c0_i32_1 = arith.constant 0 : i32
    %c0_i32_2 = arith.constant 0 : i32
    return %c0_i32, %c0_i32_0, %c0_i32_1 : i32, i32, i32
  }
  func.func @transform_3(%arg0: i32) -> (i32, i32) {
    %c0_i32 = arith.constant 0 : i32
    %c0_i32_0 = arith.constant 0 : i32
    %c0_i32_1 = arith.constant 0 : i32
    return %c0_i32, %c0_i32_0 : i32, i32
  }
  func.func @transform_4(%arg0: i32) -> (i32, i32) {
    %c0_i32 = arith.constant 0 : i32
    %c0_i32_0 = arith.constant 0 : i32
    %c0_i32_1 = arith.constant 0 : i32
    return %c0_i32, %c0_i32_0 : i32, i32
  }
  func.func @transform_5(%arg0: i32) -> (i32, i32) {
    %c0_i32 = arith.constant 0 : i32
    %c0_i32_0 = arith.constant 0 : i32
    return %arg0, %c0_i32 : i32, i32
  }
}

module attributes {stable_mosaic.version = 11 : i64} {
  func.func @highway_kernel(%arg0: i32, %arg1: memref<16x128xf32, #tpu.memory_space<vmem>>, %arg2: memref<3x128x256xbf16, #tpu.memory_space<vmem>>, %arg3: memref<3x1x256xf32, #tpu.memory_space<vmem>>, %arg4: memref<128x128xbf16, #tpu.memory_space<vmem>>, %arg5: memref<1x128xf32, #tpu.memory_space<vmem>>, %arg6: memref<16x128xf32, #tpu.memory_space<vmem>>) attributes {dimension_semantics = [#tpu.dimension_semantics<parallel>], iteration_bounds = array<i64: 2>, scalar_prefetch = 0 : i64, scratch_operands = 0 : i64, tpu.core_type = #tpu.core_type<tc>, window_params = [{transform_indices = @transform_0, window_bounds = array<i64: 16, 128>}, {pipeline_mode = #tpu.pipeline_mode<synchronous>, transform_indices = @transform_1, window_bounds = array<i64: 3, 128, 256>}, {pipeline_mode = #tpu.pipeline_mode<synchronous>, transform_indices = @transform_2, window_bounds = array<i64: 3, 1, 256>}, {pipeline_mode = #tpu.pipeline_mode<synchronous>, transform_indices = @transform_3, window_bounds = array<i64: 128, 128>}, {pipeline_mode = #tpu.pipeline_mode<synchronous>, transform_indices = @transform_4, window_bounds = array<i64: 1, 128>}, {transform_indices = @transform_5, window_bounds = array<i64: 16, 128>}]} {
    %c0 = arith.constant 0 : index
    %c0_0 = arith.constant 0 : index
    %0 = vector.load %arg1[%c0, %c0_0] : memref<16x128xf32, #tpu.memory_space<vmem>>, vector<16x128xf32>
    %c0_1 = arith.constant 0 : index
    %c0_2 = arith.constant 0 : index
    %c0_3 = arith.constant 0 : index
    %1 = vector.load %arg2[%c0_1, %c0_2, %c0_3] : memref<3x128x256xbf16, #tpu.memory_space<vmem>>, vector<1x128x256xbf16>
    %2 = vector.shape_cast %1 : vector<1x128x256xbf16> to vector<128x256xbf16>
    %c0_4 = arith.constant 0 : index
    %c0_5 = arith.constant 0 : index
    %c0_6 = arith.constant 0 : index
    %3 = vector.load %arg3[%c0_4, %c0_5, %c0_6] : memref<3x1x256xf32, #tpu.memory_space<vmem>>, vector<1x1x256xf32>
    %4 = vector.shape_cast %3 : vector<1x1x256xf32> to vector<1x256xf32>
    %5 = arith.truncf %0 : vector<16x128xf32> to vector<16x128xbf16>
    %cst = arith.constant dense<0.000000e+00> : vector<16x256xf32>
    %6 = tpu.matmul %5, %2, %cst {dimension_numbers = #tpu.dot_dimension_numbers<[1], [0], [0], [1], [0, 0, 1, 1], [], []>} : vector<16x128xbf16>, vector<128x256xbf16>, vector<16x256xf32> -> vector<16x256xf32>
    %7 = vector.broadcast %4 : vector<1x256xf32> to vector<16x256xf32>
    %8 = arith.addf %6, %7 : vector<16x256xf32>
    %9 = vector.extract_strided_slice %8 {offsets = [0, 0], sizes = [16, 128], strides = [1, 1]} : vector<16x256xf32> to vector<16x128xf32>
    %10 = arith.negf %9 : vector<16x128xf32>
    %11 = math.exp %10 : vector<16x128xf32>
    %cst_7 = arith.constant 1.000000e+00 : f32
    %12 = vector.broadcast %cst_7 : f32 to vector<16x128xf32>
    %13 = arith.addf %12, %11 : vector<16x128xf32>
    %14 = arith.divf %12, %13 : vector<16x128xf32>
    %15 = vector.extract_strided_slice %8 {offsets = [0, 128], sizes = [16, 128], strides = [1, 1]} : vector<16x256xf32> to vector<16x128xf32>
    %cst_8 = arith.constant 0.000000e+00 : f32
    %16 = vector.broadcast %cst_8 : f32 to vector<16x128xf32>
    %17 = arith.maximumf %15, %16 : vector<16x128xf32>
    %18 = arith.subf %17, %0 : vector<16x128xf32>
    %19 = arith.mulf %14, %18 : vector<16x128xf32>
    %20 = arith.addf %0, %19 : vector<16x128xf32>
    %c1 = arith.constant 1 : index
    %c0_9 = arith.constant 0 : index
    %c0_10 = arith.constant 0 : index
    %21 = vector.load %arg2[%c1, %c0_9, %c0_10] : memref<3x128x256xbf16, #tpu.memory_space<vmem>>, vector<1x128x256xbf16>
    %22 = vector.shape_cast %21 : vector<1x128x256xbf16> to vector<128x256xbf16>
    %c1_11 = arith.constant 1 : index
    %c0_12 = arith.constant 0 : index
    %c0_13 = arith.constant 0 : index
    %23 = vector.load %arg3[%c1_11, %c0_12, %c0_13] : memref<3x1x256xf32, #tpu.memory_space<vmem>>, vector<1x1x256xf32>
    %24 = vector.shape_cast %23 : vector<1x1x256xf32> to vector<1x256xf32>
    %25 = arith.truncf %20 : vector<16x128xf32> to vector<16x128xbf16>
    %cst_14 = arith.constant dense<0.000000e+00> : vector<16x256xf32>
    %26 = tpu.matmul %25, %22, %cst_14 {dimension_numbers = #tpu.dot_dimension_numbers<[1], [0], [0], [1], [0, 0, 1, 1], [], []>} : vector<16x128xbf16>, vector<128x256xbf16>, vector<16x256xf32> -> vector<16x256xf32>
    %27 = vector.broadcast %24 : vector<1x256xf32> to vector<16x256xf32>
    %28 = arith.addf %26, %27 : vector<16x256xf32>
    %29 = vector.extract_strided_slice %28 {offsets = [0, 0], sizes = [16, 128], strides = [1, 1]} : vector<16x256xf32> to vector<16x128xf32>
    %30 = arith.negf %29 : vector<16x128xf32>
    %31 = math.exp %30 : vector<16x128xf32>
    %cst_15 = arith.constant 1.000000e+00 : f32
    %32 = vector.broadcast %cst_15 : f32 to vector<16x128xf32>
    %33 = arith.addf %32, %31 : vector<16x128xf32>
    %34 = arith.divf %32, %33 : vector<16x128xf32>
    %35 = vector.extract_strided_slice %28 {offsets = [0, 128], sizes = [16, 128], strides = [1, 1]} : vector<16x256xf32> to vector<16x128xf32>
    %cst_16 = arith.constant 0.000000e+00 : f32
    %36 = vector.broadcast %cst_16 : f32 to vector<16x128xf32>
    %37 = arith.maximumf %35, %36 : vector<16x128xf32>
    %38 = arith.subf %37, %20 : vector<16x128xf32>
    %39 = arith.mulf %34, %38 : vector<16x128xf32>
    %40 = arith.addf %20, %39 : vector<16x128xf32>
    %c2 = arith.constant 2 : index
    %c0_17 = arith.constant 0 : index
    %c0_18 = arith.constant 0 : index
    %41 = vector.load %arg2[%c2, %c0_17, %c0_18] : memref<3x128x256xbf16, #tpu.memory_space<vmem>>, vector<1x128x256xbf16>
    %42 = vector.shape_cast %41 : vector<1x128x256xbf16> to vector<128x256xbf16>
    %c2_19 = arith.constant 2 : index
    %c0_20 = arith.constant 0 : index
    %c0_21 = arith.constant 0 : index
    %43 = vector.load %arg3[%c2_19, %c0_20, %c0_21] : memref<3x1x256xf32, #tpu.memory_space<vmem>>, vector<1x1x256xf32>
    %44 = vector.shape_cast %43 : vector<1x1x256xf32> to vector<1x256xf32>
    %45 = arith.truncf %40 : vector<16x128xf32> to vector<16x128xbf16>
    %cst_22 = arith.constant dense<0.000000e+00> : vector<16x256xf32>
    %46 = tpu.matmul %45, %42, %cst_22 {dimension_numbers = #tpu.dot_dimension_numbers<[1], [0], [0], [1], [0, 0, 1, 1], [], []>} : vector<16x128xbf16>, vector<128x256xbf16>, vector<16x256xf32> -> vector<16x256xf32>
    %47 = vector.broadcast %44 : vector<1x256xf32> to vector<16x256xf32>
    %48 = arith.addf %46, %47 : vector<16x256xf32>
    %49 = vector.extract_strided_slice %48 {offsets = [0, 0], sizes = [16, 128], strides = [1, 1]} : vector<16x256xf32> to vector<16x128xf32>
    %50 = arith.negf %49 : vector<16x128xf32>
    %51 = math.exp %50 : vector<16x128xf32>
    %cst_23 = arith.constant 1.000000e+00 : f32
    %52 = vector.broadcast %cst_23 : f32 to vector<16x128xf32>
    %53 = arith.addf %52, %51 : vector<16x128xf32>
    %54 = arith.divf %52, %53 : vector<16x128xf32>
    %55 = vector.extract_strided_slice %48 {offsets = [0, 128], sizes = [16, 128], strides = [1, 1]} : vector<16x256xf32> to vector<16x128xf32>
    %cst_24 = arith.constant 0.000000e+00 : f32
    %56 = vector.broadcast %cst_24 : f32 to vector<16x128xf32>
    %57 = arith.maximumf %55, %56 : vector<16x128xf32>
    %58 = arith.subf %57, %40 : vector<16x128xf32>
    %59 = arith.mulf %54, %58 : vector<16x128xf32>
    %60 = arith.addf %40, %59 : vector<16x128xf32>
    %61 = arith.truncf %60 : vector<16x128xf32> to vector<16x128xbf16>
    %c0_25 = arith.constant 0 : index
    %c0_26 = arith.constant 0 : index
    %62 = vector.load %arg4[%c0_25, %c0_26] : memref<128x128xbf16, #tpu.memory_space<vmem>>, vector<128x128xbf16>
    %cst_27 = arith.constant dense<0.000000e+00> : vector<16x128xf32>
    %63 = tpu.matmul %61, %62, %cst_27 {dimension_numbers = #tpu.dot_dimension_numbers<[1], [0], [0], [1], [0, 0, 1, 1], [], []>} : vector<16x128xbf16>, vector<128x128xbf16>, vector<16x128xf32> -> vector<16x128xf32>
    %c0_28 = arith.constant 0 : index
    %c0_29 = arith.constant 0 : index
    %64 = vector.load %arg5[%c0_28, %c0_29] : memref<1x128xf32, #tpu.memory_space<vmem>>, vector<1x128xf32>
    %65 = vector.broadcast %64 : vector<1x128xf32> to vector<16x128xf32>
    %66 = arith.addf %63, %65 : vector<16x128xf32>
    %c0_30 = arith.constant 0 : index
    %c0_31 = arith.constant 0 : index
    %67 = vector.load %arg6[%c0_30, %c0_31] : memref<16x128xf32, #tpu.memory_space<vmem>>, vector<16x128xf32>
    tpu.vector_store %arg6[%c0_30, %c0_31], %66 {strides = array<i32>} : memref<16x128xf32, #tpu.memory_space<vmem>>, vector<16x128xf32>,
    return
  }
  func.func @transform_0(%arg0: i32) -> (i32, i32) {
    %c0_i32 = arith.constant 0 : i32
    %c0_i32_0 = arith.constant 0 : i32
    return %arg0, %c0_i32 : i32, i32
  }
  func.func @transform_1(%arg0: i32) -> (i32, i32, i32) {
    %c0_i32 = arith.constant 0 : i32
    %c0_i32_0 = arith.constant 0 : i32
    %c0_i32_1 = arith.constant 0 : i32
    %c0_i32_2 = arith.constant 0 : i32
    return %c0_i32, %c0_i32_0, %c0_i32_1 : i32, i32, i32
  }
  func.func @transform_2(%arg0: i32) -> (i32, i32, i32) {
    %c0_i32 = arith.constant 0 : i32
    %c0_i32_0 = arith.constant 0 : i32
    %c0_i32_1 = arith.constant 0 : i32
    %c0_i32_2 = arith.constant 0 : i32
    return %c0_i32, %c0_i32_0, %c0_i32_1 : i32, i32, i32
  }
  func.func @transform_3(%arg0: i32) -> (i32, i32) {
    %c0_i32 = arith.constant 0 : i32
    %c0_i32_0 = arith.constant 0 : i32
    %c0_i32_1 = arith.constant 0 : i32
    return %c0_i32, %c0_i32_0 : i32, i32
  }
  func.func @transform_4(%arg0: i32) -> (i32, i32) {
    %c0_i32 = arith.constant 0 : i32
    %c0_i32_0 = arith.constant 0 : i32
    %c0_i32_1 = arith.constant 0 : i32
    return %c0_i32, %c0_i32_0 : i32, i32
  }
  func.func @transform_5(%arg0: i32) -> (i32, i32) {
    %c0_i32 = arith.constant 0 : i32
    %c0_i32_0 = arith.constant 0 : i32
    return %arg0, %c0_i32 : i32, i32
  }
}

</mosaic_0001>

<llo_original>
// kernel: tpu_custom_call.1
$region0: #{tpu_custom_call.1}
  #allocation0 [shape = 'u32[]', space=smem, size = 0x4, offset = 0x4, fixed_abs, tag = 'smem constant byte address 0x4 - core index']
  #allocation1 [shape = 'u32[144,128]{1,0:T(1,128)}', space=vmem, size = 0x12000, scoped, tag = 'internal scratch']
  %s0 = inlined_call_operand.hbm [shape: f32[32,128], index: 0, kind: input, shape index: {}]
  %s1 = inlined_call_operand.hbm [shape: bf16[3,128,256], index: 1, kind: input, shape index: {}]
  %s2 = inlined_call_operand.vmem [shape: f32[3,1,256], index: 2, kind: input, shape index: {}]
  %s3 = inlined_call_operand.hbm [shape: bf16[128,128], index: 3, kind: input, shape index: {}]
  %s4 = inlined_call_operand.vmem [shape: f32[1,128], index: 4, kind: input, shape index: {}]
  %s5 = inlined_call_operand.hbm [shape: f32[32,128], index: 5, kind: output, shape index: {}]
  %s6 = sld [smem:[#allocation0]]
  $region65: #{tpu_custom_call.1} parent=0
    _
  %s8 = ssub.s32 1, %s6
  %s9 = scalar_select 0, %s8, %s6
  $region1: #{tpu_custom_call.1} parent=0
    #allocation2 [shape = 'u8[16384]{0}', space=vmem, size = 0x4000, scoped, tag = 'input window, operand 0']
    #allocation3 [shape = 's32[2]{0}', space=sflag, size = 0x8, scoped, tag = 'scoped memory for tpu_custom_call.1']
    #allocation4 [shape = 's32[2]{0}', space=sflag, size = 0x8, scoped, tag = 'scoped memory for tpu_custom_call.1']
    #allocation5 [shape = 'u8[196608]{0}', space=vmem, size = 0x30000, scoped, tag = 'input window, operand 1, single buffered']
    #allocation6 [shape = 's32[1]{0}', space=sflag, size = 0x4, scoped, tag = 'scoped memory for tpu_custom_call.1']
    #allocation7 [shape = 'u8[32768]{0}', space=vmem, size = 0x8000, scoped, tag = 'input window, operand 3, single buffered']
    #allocation8 [shape = 'u8[16384]{0}', space=vmem, size = 0x4000, scoped, tag = 'output window, operand 0']
    %10 = vsyncpa [#allocation3], 0
    %s11 = scalar_lea.sflag [#allocation3], 1
    %12 = vsyncpa %s11, 0
    %13 = vsyncpa [#allocation6], 0
    %14 = vsyncpa [#allocation4], 0
    %s15 = scalar_lea.sflag [#allocation4], 1
    %16 = vsyncpa %s15, 0
    loop: start=0, step=1, limit=4
    $region2: #{tpu_custom_call.1} parent=1 // loop_pre_header
      _
    $region3: #{tpu_custom_call.1} parent=1 // loop_header
      %s18 = sphi 0, %s22
      %p19 = scmp.ge.s32.totalorder %s18, 4
      %s28 = sphi 0, %s30
      %s31 = sphi 0, %s28
      %s32 = sphi 0, %s31
      %s48 = sphi 0, %s32
      %s52 = sphi 0, %s52
      %s54 = sphi 0, %s52
      %s55 = sphi 0, %s54
      %s69 = sphi 0, %s55
      %s73 = sphi 0, %s73
      %s75 = sphi 0, %s73
      %s76 = sphi 0, %s75
      %s90 = sphi 0, %s76
      %s94 = sphi 0, %s94
      %s96 = sphi 0, %s94
      %s97 = sphi 0, %s96
      %s111 = sphi 0, %s97
      %s115 = sphi 0, %s115
      %s117 = sphi 0, %s115
      %s118 = sphi 0, %s117
      %s132 = sphi 0, %s118
      %s138 = sphi 0, %s140
      %s141 = sphi 0, %s138
      %s142 = sphi 0, %s141
      %s158 = sphi 0, %s142
    $region4: #{tpu_custom_call.1} parent=1 // loop_header_branch
      %21 = sbr.rel (%p19) target = $region8
    $region5: #{tpu_custom_call.1} parent=1 // loop_body
      %s23 = ssub.s32 %s18, 1
      %s24 = ssub.s32 %s18, 2
      %s25 = sadd.s32 %s18, 1
      %s26 = ssub.s32 %s18, %s25
      %p27 = scmp.eq.s32.totalorder %s26, 0
      %s29 = sadd.s32 %s28, 1
      %s30 = scalar_select %p27, %s28, %s29
      %p33 = pneg %p27
      %p34 = scmp.eq.s32.totalorder %s18, 1
      %p35 = por %p33, %p34
      %p36 = scmp.ne.s32.totalorder %s28, %s31
      %p37 = scmp.eq.s32.totalorder %s18, 0
      %p38 = por %p36, %p37
      %p39 = scmp.ne.s32.totalorder %s28, %s31
      %p40 = scmp.eq.s32.totalorder %s23, 1
      %p41 = por %p39, %p40
      %p42 = scmp.ne.s32.totalorder %s31, %s32
      %p43 = scmp.eq.s32.totalorder %s23, 0
      %p44 = por %p42, %p43
      %p45 = scmp.ne.s32.totalorder %s31, %s32
      %p46 = scmp.eq.s32.totalorder %s24, 1
      %p47 = por %p45, %p46
      %p49 = scmp.ne.s32.totalorder %s32, %s48
      %p50 = scmp.eq.s32.totalorder %s24, 0
      %p51 = por %p49, %p50
      %s53 = sadd.s32 %s52, 1
      %p56 = scmp.eq.s32.totalorder %s18, 1
      %p57 = scmp.ne.s32.totalorder %s52, %s54
      %p58 = scmp.eq.s32.totalorder %s18, 0
      %p59 = por %p57, %p58
      %p60 = scmp.ne.s32.totalorder %s52, %s54
      %p61 = scmp.eq.s32.totalorder %s23, 1
      %p62 = por %p60, %p61
      %p63 = scmp.ne.s32.totalorder %s54, %s55
      %p64 = scmp.eq.s32.totalorder %s23, 0
      %p65 = por %p63, %p64
      %p66 = scmp.ne.s32.totalorder %s54, %s55
      %p67 = scmp.eq.s32.totalorder %s24, 1
      %p68 = por %p66, %p67
      %p70 = scmp.ne.s32.totalorder %s55, %s69
      %p71 = scmp.eq.s32.totalorder %s24, 0
      %p72 = por %p70, %p71
      %s74 = sadd.s32 %s73, 1
      %p77 = scmp.eq.s32.totalorder %s18, 1
      %p78 = scmp.ne.s32.totalorder %s73, %s75
      %p79 = scmp.eq.s32.totalorder %s18, 0
      %p80 = por %p78, %p79
      %p81 = scmp.ne.s32.totalorder %s73, %s75
      %p82 = scmp.eq.s32.totalorder %s23, 1
      %p83 = por %p81, %p82
      %p84 = scmp.ne.s32.totalorder %s75, %s76
      %p85 = scmp.eq.s32.totalorder %s23, 0
      %p86 = por %p84, %p85
      %p87 = scmp.ne.s32.totalorder %s75, %s76
      %p88 = scmp.eq.s32.totalorder %s24, 1
      %p89 = por %p87, %p88
      %p91 = scmp.ne.s32.totalorder %s76, %s90
      %p92 = scmp.eq.s32.totalorder %s24, 0
      %p93 = por %p91, %p92
      %s95 = sadd.s32 %s94, 1
      %p98 = scmp.eq.s32.totalorder %s18, 1
      %p99 = scmp.ne.s32.totalorder %s94, %s96
      %p100 = scmp.eq.s32.totalorder %s18, 0
      %p101 = por %p99, %p100
      %p102 = scmp.ne.s32.totalorder %s94, %s96
      %p103 = scmp.eq.s32.totalorder %s23, 1
      %p104 = por %p102, %p103
      %p105 = scmp.ne.s32.totalorder %s96, %s97
      %p106 = scmp.eq.s32.totalorder %s23, 0
      %p107 = por %p105, %p106
      %p108 = scmp.ne.s32.totalorder %s96, %s97
      %p109 = scmp.eq.s32.totalorder %s24, 1
      %p110 = por %p108, %p109
      %p112 = scmp.ne.s32.totalorder %s97, %s111
      %p113 = scmp.eq.s32.totalorder %s24, 0
      %p114 = por %p112, %p113
      %s116 = sadd.s32 %s115, 1
      %p119 = scmp.eq.s32.totalorder %s18, 1
      %p120 = scmp.ne.s32.totalorder %s115, %s117
      %p121 = scmp.eq.s32.totalorder %s18, 0
      %p122 = por %p120, %p121
      %p123 = scmp.ne.s32.totalorder %s115, %s117
      %p124 = scmp.eq.s32.totalorder %s23, 1
      %p125 = por %p123, %p124
      %p126 = scmp.ne.s32.totalorder %s117, %s118
      %p127 = scmp.eq.s32.totalorder %s23, 0
      %p128 = por %p126, %p127
      %p129 = scmp.ne.s32.totalorder %s117, %s118
      %p130 = scmp.eq.s32.totalorder %s24, 1
      %p131 = por %p129, %p130
      %p133 = scmp.ne.s32.totalorder %s118, %s132
      %p134 = scmp.eq.s32.totalorder %s24, 0
      %p135 = por %p133, %p134
      %s136 = ssub.s32 %s18, %s25
      %p137 = scmp.eq.s32.totalorder %s136, 0
      %s139 = sadd.s32 %s138, 1
      %s140 = scalar_select %p137, %s138, %s139
      %p143 = pneg %p137
      %p144 = scmp.eq.s32.totalorder %s18, 1
      %p145 = por %p143, %p144
      %p146 = scmp.ne.s32.totalorder %s138, %s141
      %p147 = scmp.eq.s32.totalorder %s18, 0
      %p148 = por %p146, %p147
      %p149 = scmp.ne.s32.totalorder %s138, %s141
      %p150 = scmp.eq.s32.totalorder %s23, 1
      %p151 = por %p149, %p150
      %p152 = scmp.ne.s32.totalorder %s141, %s142
      %p153 = scmp.eq.s32.totalorder %s23, 0
      %p154 = por %p152, %p153
      %p155 = scmp.ne.s32.totalorder %s141, %s142
      %p156 = scmp.eq.s32.totalorder %s24, 1
      %p157 = por %p155, %p156
      %p159 = scmp.ne.s32.totalorder %s142, %s158
      %p160 = scmp.eq.s32.totalorder %s24, 0
      %p161 = por %p159, %p160
      %p162 = scmp.le.s32.totalorder 1, %s18
      %p163 = scmp.lt.s32.totalorder %s18, 3
      %p164 = pnand %p162, %p163
      %p165 = pneg %p164
      // Predicated region
      $region9: #{tpu_custom_call.1} parent=5 // pred_check
        _
      $region10: #{tpu_custom_call.1} parent=5 // pred_check_branch
        %167 = sbr.rel (%p164) target = $region12
      $region11: #{tpu_custom_call.1} parent=5 // pred_region
        %s168 = ssub.s32 %s18, 1
        // Predicated region
        $region13: #{tpu_custom_call.1} parent=11 // pred_check
          %p169 = pneg %p65
        $region14: #{tpu_custom_call.1} parent=11 // pred_check_branch
          %171 = sbr.rel (%p169) target = $region16
        $region15: #{tpu_custom_call.1} parent=11 // pred_region
          %s173 = ssub.s32 6144, 6144
          %174 = vsyncadd [#allocation6], %s173
          %s175 = sshll.u32 [#allocation5], 4
          %s176 = int_to_ptr.vmem [resolvable:$true] %s175
          %181 = dma.hbm_to_vmem [thread:$0]  %s1, 6144, %s176, [#allocation6], 128, 128, 8
        $region16: #{tpu_custom_call.1} parent=11 // pred_fallthru
          _
        // Predicated region
        $region17: #{tpu_custom_call.1} parent=11 // pred_check
          %p182 = pneg %p86
        $region18: #{tpu_custom_call.1} parent=11 // pred_check_branch
          %184 = sbr.rel (%p182) target = $region20
        $region19: #{tpu_custom_call.1} parent=11 // pred_region
          _
        $region20: #{tpu_custom_call.1} parent=11 // pred_fallthru
          _
        // Predicated region
        $region21: #{tpu_custom_call.1} parent=11 // pred_check
          %p185 = pneg %p107
        $region22: #{tpu_custom_call.1} parent=11 // pred_check_branch
          %187 = sbr.rel (%p185) target = $region24
        $region23: #{tpu_custom_call.1} parent=11 // pred_region
          %s189 = ssub.s32 1024, 1024
          %190 = vsyncadd [#allocation6], %s189
          %s191 = sshll.u32 [#allocation7], 4
          %s192 = int_to_ptr.vmem [resolvable:$true] %s191
          %197 = dma.hbm_to_vmem [thread:$0]  %s3, 1024, %s192, [#allocation6], 64, 64, 4
        $region24: #{tpu_custom_call.1} parent=11 // pred_fallthru
          _
        // Predicated region
        $region25: #{tpu_custom_call.1} parent=11 // pred_check
          %p198 = pneg %p128
        $region26: #{tpu_custom_call.1} parent=11 // pred_check_branch
          %200 = sbr.rel (%p198) target = $region28
        $region27: #{tpu_custom_call.1} parent=11 // pred_region
          _
        $region28: #{tpu_custom_call.1} parent=11 // pred_fallthru
          _
      $region12: #{tpu_custom_call.1} parent=5 // pred_fallthru
        _
      %p201 = scmp.lt.s32.totalorder %s18, 2
      // Predicated region
      $region29: #{tpu_custom_call.1} parent=5 // pred_check
        %p202 = pneg %p201
      $region30: #{tpu_custom_call.1} parent=5 // pred_check_branch
        %204 = sbr.rel (%p202) target = $region32
      $region31: #{tpu_custom_call.1} parent=5 // pred_region
        // Predicated region
        $region33: #{tpu_custom_call.1} parent=31 // pred_check
          %p205 = pneg %p38
        $region34: #{tpu_custom_call.1} parent=31 // pred_check_branch
          %207 = sbr.rel (%p205) target = $region36
        $region35: #{tpu_custom_call.1} parent=31 // pred_region
          %s208 = sand.u32 %s28, 1
          %s209 = scalar_lea.sflag [#allocation3], %s208
          %s210 = sand.u32 %s28, 1
          %s211 = smul.addr %s210, 16
          %s212 = scalar_lea.vmem [#allocation2], %s211
          %s213 = smul.u32 2, %s18
          %s215 = ssub.s32 256, 256
          %216 = vsyncadd %s209, %s215
          %s217 = smul.addr %s213, 128
          %s218 = scalar_lea.hbm %s0, %s217
          %s219 = sshll.u32 %s212, 4
          %s220 = int_to_ptr.vmem [resolvable:$true] %s219
          %225 = dma.hbm_to_vmem [thread:$0]  %s218, 256, %s220, %s209, 128, 128, 8
        $region36: #{tpu_custom_call.1} parent=31 // pred_fallthru
          _
      $region32: #{tpu_custom_call.1} parent=5 // pred_fallthru
        _
      %p226 = scmp.le.s32.totalorder 1, %s18
      %p227 = scmp.lt.s32.totalorder %s18, 3
      %p228 = pnand %p226, %p227
      %p229 = pneg %p228
      // Predicated region
      $region37: #{tpu_custom_call.1} parent=5 // pred_check
        _
      $region38: #{tpu_custom_call.1} parent=5 // pred_check_branch
        %231 = sbr.rel (%p228) target = $region40
      $region39: #{tpu_custom_call.1} parent=5 // pred_region
        %s232 = ssub.s32 %s18, 1
        %s233 = sand.u32 %s31, 1
        %s234 = scalar_lea.sflag [#allocation3], %s233
        %s235 = sand.u32 %s31, 1
        %s236 = smul.addr %s235, 16
        %s237 = scalar_lea.vmem [#allocation2], %s236
        // Predicated region
        $region41: #{tpu_custom_call.1} parent=39 // pred_check
          %p238 = pneg %p44
        $region42: #{tpu_custom_call.1} parent=39 // pred_check_branch
          %240 = sbr.rel (%p238) target = $region44
        $region43: #{tpu_custom_call.1} parent=39 // pred_region
          %241 = dma.done %s234, 256
        $region44: #{tpu_custom_call.1} parent=39 // pred_fallthru
          _
        // Predicated region
        $region45: #{tpu_custom_call.1} parent=39 // pred_check
          %p242 = pneg %p65
        $region46: #{tpu_custom_call.1} parent=39 // pred_check_branch
          %244 = sbr.rel (%p242) target = $region48
        $region47: #{tpu_custom_call.1} parent=39 // pred_region
          %245 = dma.done [#allocation6], 6144
        $region48: #{tpu_custom_call.1} parent=39 // pred_fallthru
          _
        // Predicated region
        $region49: #{tpu_custom_call.1} parent=39 // pred_check
          %p246 = pneg %p107
        $region50: #{tpu_custom_call.1} parent=39 // pred_check_branch
          %248 = sbr.rel (%p246) target = $region52
        $region51: #{tpu_custom_call.1} parent=39 // pred_region
          %249 = dma.done [#allocation6], 1024
        $region52: #{tpu_custom_call.1} parent=39 // pred_fallthru
          _
        %s250 = sand.u32 %s31, 1
        %s251 = scalar_lea.sflag [#allocation3], %s250
        %s252 = sand.u32 %s31, 1
        %s253 = smul.addr %s252, 16
        %s254 = scalar_lea.vmem [#allocation2], %s253
        %p255 = pneg %p44
        %p256 = pneg %p41
        %p257 = pneg %p65
        %p258 = pneg %p62
        %p259 = pneg %p86
        %p260 = pneg %p83
        %p261 = pneg %p107
        %p262 = pneg %p104
        %p263 = pneg %p128
        %p264 = pneg %p125
        %p265 = pneg %p154
        %p266 = pneg %p151
        %s267 = sand.u32 %s141, 1
        %s268 = scalar_lea.sflag [#allocation4], %s267
        %s269 = sand.u32 %s141, 1
        %s270 = smul.addr %s269, 16
        %s271 = scalar_lea.vmem [#allocation8], %s270
        %s272 = smul.u32 2, %s23
        %s273 = smul.u32 2, %s23
        %v275 = vld [vmem:[%s237] sm:$0xff]
        %v276 = vld [vmem:[%s237 + $0x8] sm:$0xff]
        %v277 = vld [vmem:[#allocation5] sm:$0xff]
        %v278 = vld [vmem:[#allocation5 + $0x8] sm:$0xff]
        %v279 = vld [vmem:[#allocation5 + $0x10] sm:$0xff]
        %v280 = vld [vmem:[#allocation5 + $0x18] sm:$0xff]
        %v281 = vld [vmem:[#allocation5 + $0x20] sm:$0xff]
        %v282 = vld [vmem:[#allocation5 + $0x28] sm:$0xff]
        %v283 = vld [vmem:[#allocation5 + $0x30] sm:$0xff]
        %v284 = vld [vmem:[#allocation5 + $0x38] sm:$0xff]
        %v285 = vld [vmem:[#allocation5 + $0x40] sm:$0xff]
        %v286 = vld [vmem:[#allocation5 + $0x48] sm:$0xff]
        %v287 = vld [vmem:[#allocation5 + $0x50] sm:$0xff]
        %v288 = vld [vmem:[#allocation5 + $0x58] sm:$0xff]
        %v289 = vld [vmem:[#allocation5 + $0x60] sm:$0xff]
        %v290 = vld [vmem:[#allocation5 + $0x68] sm:$0xff]
        %v291 = vld [vmem:[#allocation5 + $0x70] sm:$0xff]
        %v292 = vld [vmem:[#allocation5 + $0x78] sm:$0xff]
        %v293 = vld [vmem:[%s2] sm:$0x3]
        %v294 = vpack.c.bf16 %v276, %v275
        %v296 = vlaneseq
        %v297 = vshrl.u32 %v296, 7
        %v298 = vsub.s32 0, %v297
        %v299 = vrot.slane %v293, %v298
        %v300 = vlaneseq
        %v301 = vshrl.u32 %v300, 7
        %v302 = vsub.s32 1, %v301
        %v303 = vrot.slane %v293, %v302
        %v322 = vunpack.c.l.b16 %v277
        %v323 = vunpack.c.h.b16 %v277
        %v324 = vunpack.c.l.b16 %v278
        %v325 = vunpack.c.h.b16 %v278
        %v326 = vunpack.c.l.b16 %v279
        %v327 = vunpack.c.h.b16 %v279
        %v328 = vunpack.c.l.b16 %v280
        %v329 = vunpack.c.h.b16 %v280
        %v330 = vunpack.c.l.b16 %v281
        %v331 = vunpack.c.h.b16 %v281
        %v332 = vunpack.c.l.b16 %v282
        %v333 = vunpack.c.h.b16 %v282
        %v334 = vunpack.c.l.b16 %v283
        %v335 = vunpack.c.h.b16 %v283
        %v336 = vunpack.c.l.b16 %v284
        %v337 = vunpack.c.h.b16 %v284
        %v338 = vunpack.c.l.b16 %v285
        %v339 = vunpack.c.h.b16 %v285
        %v340 = vunpack.c.l.b16 %v286
        %v341 = vunpack.c.h.b16 %v286
        %v342 = vunpack.c.l.b16 %v287
        %v343 = vunpack.c.h.b16 %v287
        %v344 = vunpack.c.l.b16 %v288
        %v345 = vunpack.c.h.b16 %v288
        %v346 = vunpack.c.l.b16 %v289
        %v347 = vunpack.c.h.b16 %v289
        %v348 = vunpack.c.l.b16 %v290
        %v349 = vunpack.c.h.b16 %v290
        %v350 = vunpack.c.l.b16 %v291
        %v351 = vunpack.c.h.b16 %v291
        %v352 = vunpack.c.l.b16 %v292
        %v353 = vunpack.c.h.b16 %v292
        %v354 = vpack.c.b16 %v324, %v322
        %v355 = vpack.c.b16 %v325, %v323
        %v356 = vpack.c.b16 %v328, %v326
        %v357 = vpack.c.b16 %v329, %v327
        %v358 = vpack.c.b16 %v332, %v330
        %v359 = vpack.c.b16 %v333, %v331
        %v360 = vpack.c.b16 %v336, %v334
        %v361 = vpack.c.b16 %v337, %v335
        %v362 = vpack.c.b16 %v340, %v338
        %v363 = vpack.c.b16 %v341, %v339
        %v364 = vpack.c.b16 %v344, %v342
        %v365 = vpack.c.b16 %v345, %v343
        %v366 = vpack.c.b16 %v348, %v346
        %v367 = vpack.c.b16 %v349, %v347
        %v368 = vpack.c.b16 %v352, %v350
        %v369 = vpack.c.b16 %v353, %v351
        %386 = vmatprep.subr.bf16.mxu0 %v355
        %387 = vmatpush1.bf16.msra.mxu0 %v354
        %388 = vmatprep.subr.bf16.mxu0 %v357
        %389 = vmatpush1.bf16.msra.mxu0 %v356
        %390 = vmatprep.subr.bf16.mxu0 %v359
        %391 = vmatpush1.bf16.msra.mxu0 %v358
        %392 = vmatprep.subr.bf16.mxu0 %v361
        %393 = vmatpush1.bf16.msra.mxu0 %v360
        %394 = vmatprep.subr.bf16.mxu0 %v363
        %395 = vmatpush1.bf16.msra.mxu0 %v362
        %396 = vmatprep.subr.bf16.mxu0 %v365
        %397 = vmatpush1.bf16.msra.mxu0 %v364
        %398 = vmatprep.subr.bf16.mxu0 %v367
        %399 = vmatpush1.bf16.msra.mxu0 %v366
        %400 = vmatprep.subr.bf16.mxu0 %v369
        %401 = vmatpush1.bf16.msra.mxu0 %v368
        %402 = vmatprep.subr.bf16.mxu0 0
        %403 = vmatpush1.bf16.msra.mxu0 0
        %404 = vmatprep.subr.bf16.mxu0 0
        %405 = vmatpush1.bf16.msra.mxu0 0
        %406 = vmatprep.subr.bf16.mxu0 0
        %407 = vmatpush1.bf16.msra.mxu0 0
        %408 = vmatprep.subr.bf16.mxu0 0
        %409 = vmatpush1.bf16.msra.mxu0 0
        %410 = vmatprep.subr.bf16.mxu0 0
        %411 = vmatpush1.bf16.msra.mxu0 0
        %412 = vmatprep.subr.bf16.mxu0 0
        %413 = vmatpush1.bf16.msra.mxu0 0
        %414 = vmatprep.subr.bf16.mxu0 0
        %415 = vmatpush1.bf16.msra.mxu0 0
        %416 = vmatprep.subr.bf16.mxu0 0
        %417 = vmatpush1.bf16.msra.mxu0 0
        %418 = vmatprep.mubr.bf16.mxu0 0
        %419 = vmatmul.mubr.bf16.gmra.mrb[0].mxu0 %v294
        %v420 = vpop.f32.mrb[0].mxu0
        %v421 = vadd.f32 %v299, %v420
        %v422 = vpop.f32.mrb[0].mxu0
        %v423 = vadd.f32 %v303, %v422
        %v424 = vpop.f32.mrb[0].mxu0
        %v425 = vadd.f32 %v299, %v424
        %v426 = vpop.f32.mrb[0].mxu0
        %v427 = vadd.f32 %v303, %v426
        %428 = vdwg.mxu0
        %v429 = vxor.u32 %v421, 2147483648
        %v430 = vxor.u32 %v425, 2147483648
        %v431 = vmul.f32 %v429, 1.442695
        %v432 = vpow.pop %v431
        %v433 = vmul.f32 %v430, 1.442695
        %v434 = vpow.pop %v433
        %v435 = vadd.f32 %v432, 1.0
        %v436 = vadd.f32 %v434, 1.0
        %v437 = vrcp.pop %v435
        %v438 = vmul.f32 1.0, %v437
        %v439 = vrcp.pop %v436
        %v440 = vmul.f32 1.0, %v439
        %v441 = vmax.f32 %v423, 0.0
        %v442 = vmax.f32 %v427, 0.0
        %v443 = vsub.f32 %v441, %v275
        %v444 = vsub.f32 %v442, %v276
        %v445 = vmul.f32 %v438, %v443
        %v446 = vmul.f32 %v440, %v444
        %v447 = vadd.f32 %v275, %v445
        %v448 = vadd.f32 %v276, %v446
        %s449 = scalar_lea.vmem [#allocation5], 128
        %v450 = vld [vmem:[%s449] sm:$0xff]
        %v451 = vld [vmem:[%s449 + $0x8] sm:$0xff]
        %v452 = vld [vmem:[%s449 + $0x10] sm:$0xff]
        %v453 = vld [vmem:[%s449 + $0x18] sm:$0xff]
        %v454 = vld [vmem:[%s449 + $0x20] sm:$0xff]
        %v455 = vld [vmem:[%s449 + $0x28] sm:$0xff]
        %v456 = vld [vmem:[%s449 + $0x30] sm:$0xff]
        %v457 = vld [vmem:[%s449 + $0x38] sm:$0xff]
        %v458 = vld [vmem:[%s449 + $0x40] sm:$0xff]
        %v459 = vld [vmem:[%s449 + $0x48] sm:$0xff]
        %v460 = vld [vmem:[%s449 + $0x50] sm:$0xff]
        %v461 = vld [vmem:[%s449 + $0x58] sm:$0xff]
        %v462 = vld [vmem:[%s449 + $0x60] sm:$0xff]
        %v463 = vld [vmem:[%s449 + $0x68] sm:$0xff]
        %v464 = vld [vmem:[%s449 + $0x70] sm:$0xff]
        %v465 = vld [vmem:[%s449 + $0x78] sm:$0xff]
        %s466 = scalar_lea.vmem %s2, 2
        %v467 = vld [vmem:[%s466] sm:$0x3]
        %v468 = vpack.c.bf16 %v448, %v447
        %v470 = vlaneseq
        %v471 = vshrl.u32 %v470, 7
        %v472 = vsub.s32 0, %v471
        %v473 = vrot.slane %v467, %v472
        %v474 = vlaneseq
        %v475 = vshrl.u32 %v474, 7
        %v476 = vsub.s32 1, %v475
        %v477 = vrot.slane %v467, %v476
        %v496 = vunpack.c.l.b16 %v450
        %v497 = vunpack.c.h.b16 %v450
        %v498 = vunpack.c.l.b16 %v451
        %v499 = vunpack.c.h.b16 %v451
        %v500 = vunpack.c.l.b16 %v452
        %v501 = vunpack.c.h.b16 %v452
        %v502 = vunpack.c.l.b16 %v453
        %v503 = vunpack.c.h.b16 %v453
        %v504 = vunpack.c.l.b16 %v454
        %v505 = vunpack.c.h.b16 %v454
        %v506 = vunpack.c.l.b16 %v455
        %v507 = vunpack.c.h.b16 %v455
        %v508 = vunpack.c.l.b16 %v456
        %v509 = vunpack.c.h.b16 %v456
        %v510 = vunpack.c.l.b16 %v457
        %v511 = vunpack.c.h.b16 %v457
        %v512 = vunpack.c.l.b16 %v458
        %v513 = vunpack.c.h.b16 %v458
        %v514 = vunpack.c.l.b16 %v459
        %v515 = vunpack.c.h.b16 %v459
        %v516 = vunpack.c.l.b16 %v460
        %v517 = vunpack.c.h.b16 %v460
        %v518 = vunpack.c.l.b16 %v461
        %v519 = vunpack.c.h.b16 %v461
        %v520 = vunpack.c.l.b16 %v462
        %v521 = vunpack.c.h.b16 %v462
        %v522 = vunpack.c.l.b16 %v463
        %v523 = vunpack.c.h.b16 %v463
        %v524 = vunpack.c.l.b16 %v464
        %v525 = vunpack.c.h.b16 %v464
        %v526 = vunpack.c.l.b16 %v465
        %v527 = vunpack.c.h.b16 %v465
        %v528 = vpack.c.b16 %v498, %v496
        %v529 = vpack.c.b16 %v499, %v497
        %v530 = vpack.c.b16 %v502, %v500
        %v531 = vpack.c.b16 %v503, %v501
        %v532 = vpack.c.b16 %v506, %v504
        %v533 = vpack.c.b16 %v507, %v505
        %v534 = vpack.c.b16 %v510, %v508
        %v535 = vpack.c.b16 %v511, %v509
        %v536 = vpack.c.b16 %v514, %v512
        %v537 = vpack.c.b16 %v515, %v513
        %v538 = vpack.c.b16 %v518, %v516
        %v539 = vpack.c.b16 %v519, %v517
        %v540 = vpack.c.b16 %v522, %v520
        %v541 = vpack.c.b16 %v523, %v521
        %v542 = vpack.c.b16 %v526, %v524
        %v543 = vpack.c.b16 %v527, %v525
        %560 = vmatprep.subr.bf16.mxu0 %v529
        %561 = vmatpush1.bf16.msra.mxu0 %v528
        %562 = vmatprep.subr.bf16.mxu0 %v531
        %563 = vmatpush1.bf16.msra.mxu0 %v530
        %564 = vmatprep.subr.bf16.mxu0 %v533
        %565 = vmatpush1.bf16.msra.mxu0 %v532
        %566 = vmatprep.subr.bf16.mxu0 %v535
        %567 = vmatpush1.bf16.msra.mxu0 %v534
        %568 = vmatprep.subr.bf16.mxu0 %v537
        %569 = vmatpush1.bf16.msra.mxu0 %v536
        %570 = vmatprep.subr.bf16.mxu0 %v539
        %571 = vmatpush1.bf16.msra.mxu0 %v538
        %572 = vmatprep.subr.bf16.mxu0 %v541
        %573 = vmatpush1.bf16.msra.mxu0 %v540
        %574 = vmatprep.subr.bf16.mxu0 %v543
        %575 = vmatpush1.bf16.msra.mxu0 %v542
        %576 = vmatprep.subr.bf16.mxu0 0
        %577 = vmatpush1.bf16.msra.mxu0 0
        %578 = vmatprep.subr.bf16.mxu0 0
        %579 = vmatpush1.bf16.msra.mxu0 0
        %580 = vmatprep.subr.bf16.mxu0 0
        %581 = vmatpush1.bf16.msra.mxu0 0
        %582 = vmatprep.subr.bf16.mxu0 0
        %583 = vmatpush1.bf16.msra.mxu0 0
        %584 = vmatprep.subr.bf16.mxu0 0
        %585 = vmatpush1.bf16.msra.mxu0 0
        %586 = vmatprep.subr.bf16.mxu0 0
        %587 = vmatpush1.bf16.msra.mxu0 0
        %588 = vmatprep.subr.bf16.mxu0 0
        %589 = vmatpush1.bf16.msra.mxu0 0
        %590 = vmatprep.subr.bf16.mxu0 0
        %591 = vmatpush1.bf16.msra.mxu0 0
        %592 = vmatprep.mubr.bf16.mxu0 0
        %593 = vmatmul.mubr.bf16.gmra.mrb[0].mxu0 %v468
        %v594 = vpop.f32.mrb[0].mxu0
        %v595 = vadd.f32 %v473, %v594
        %v596 = vpop.f32.mrb[0].mxu0
        %v597 = vadd.f32 %v477, %v596
        %v598 = vpop.f32.mrb[0].mxu0
        %v599 = vadd.f32 %v473, %v598
        %v600 = vpop.f32.mrb[0].mxu0
        %v601 = vadd.f32 %v477, %v600
        %602 = vdwg.mxu0
        %v603 = vxor.u32 %v595, 2147483648
        %v604 = vxor.u32 %v599, 2147483648
        %v605 = vmul.f32 %v603, 1.442695
        %v606 = vpow.pop %v605
        %v607 = vmul.f32 %v604, 1.442695
        %v608 = vpow.pop %v607
        %v609 = vadd.f32 %v606, 1.0
        %v610 = vadd.f32 %v608, 1.0
        %v611 = vrcp.pop %v609
        %v612 = vmul.f32 1.0, %v611
        %v613 = vrcp.pop %v610
        %v614 = vmul.f32 1.0, %v613
        %v615 = vmax.f32 %v597, 0.0
        %v616 = vmax.f32 %v601, 0.0
        %v617 = vsub.f32 %v615, %v447
        %v618 = vsub.f32 %v616, %v448
        %v619 = vmul.f32 %v612, %v617
        %v620 = vmul.f32 %v614, %v618
        %v621 = vadd.f32 %v447, %v619
        %v622 = vadd.f32 %v448, %v620
        %s623 = scalar_lea.vmem [#allocation5], 256
        %v624 = vld [vmem:[%s623] sm:$0xff]
        %v625 = vld [vmem:[%s623 + $0x8] sm:$0xff]
        %v626 = vld [vmem:[%s623 + $0x10] sm:$0xff]
        %v627 = vld [vmem:[%s623 + $0x18] sm:$0xff]
        %v628 = vld [vmem:[%s623 + $0x20] sm:$0xff]
        %v629 = vld [vmem:[%s623 + $0x28] sm:$0xff]
        %v630 = vld [vmem:[%s623 + $0x30] sm:$0xff]
        %v631 = vld [vmem:[%s623 + $0x38] sm:$0xff]
        %v632 = vld [vmem:[%s623 + $0x40] sm:$0xff]
        %v633 = vld [vmem:[%s623 + $0x48] sm:$0xff]
        %v634 = vld [vmem:[%s623 + $0x50] sm:$0xff]
        %v635 = vld [vmem:[%s623 + $0x58] sm:$0xff]
        %v636 = vld [vmem:[%s623 + $0x60] sm:$0xff]
        %v637 = vld [vmem:[%s623 + $0x68] sm:$0xff]
        %v638 = vld [vmem:[%s623 + $0x70] sm:$0xff]
        %v639 = vld [vmem:[%s623 + $0x78] sm:$0xff]
        %s640 = scalar_lea.vmem %s2, 4
        %v641 = vld [vmem:[%s640] sm:$0x3]
        %v642 = vpack.c.bf16 %v622, %v621
        %v644 = vlaneseq
        %v645 = vshrl.u32 %v644, 7
        %v646 = vsub.s32 0, %v645
        %v647 = vrot.slane %v641, %v646
        %v648 = vlaneseq
        %v649 = vshrl.u32 %v648, 7
        %v650 = vsub.s32 1, %v649
        %v651 = vrot.slane %v641, %v650
        %v670 = vunpack.c.l.b16 %v624
        %v671 = vunpack.c.h.b16 %v624
        %v672 = vunpack.c.l.b16 %v625
        %v673 = vunpack.c.h.b16 %v625
        %v674 = vunpack.c.l.b16 %v626
        %v675 = vunpack.c.h.b16 %v626
        %v676 = vunpack.c.l.b16 %v627
        %v677 = vunpack.c.h.b16 %v627
        %v678 = vunpack.c.l.b16 %v628
        %v679 = vunpack.c.h.b16 %v628
        %v680 = vunpack.c.l.b16 %v629
        %v681 = vunpack.c.h.b16 %v629
        %v682 = vunpack.c.l.b16 %v630
        %v683 = vunpack.c.h.b16 %v630
        %v684 = vunpack.c.l.b16 %v631
        %v685 = vunpack.c.h.b16 %v631
        %v686 = vunpack.c.l.b16 %v632
        %v687 = vunpack.c.h.b16 %v632
        %v688 = vunpack.c.l.b16 %v633
        %v689 = vunpack.c.h.b16 %v633
        %v690 = vunpack.c.l.b16 %v634
        %v691 = vunpack.c.h.b16 %v634
        %v692 = vunpack.c.l.b16 %v635
        %v693 = vunpack.c.h.b16 %v635
        %v694 = vunpack.c.l.b16 %v636
        %v695 = vunpack.c.h.b16 %v636
        %v696 = vunpack.c.l.b16 %v637
        %v697 = vunpack.c.h.b16 %v637
        %v698 = vunpack.c.l.b16 %v638
        %v699 = vunpack.c.h.b16 %v638
        %v700 = vunpack.c.l.b16 %v639
        %v701 = vunpack.c.h.b16 %v639
        %v702 = vpack.c.b16 %v672, %v670
        %v703 = vpack.c.b16 %v673, %v671
        %v704 = vpack.c.b16 %v676, %v674
        %v705 = vpack.c.b16 %v677, %v675
        %v706 = vpack.c.b16 %v680, %v678
        %v707 = vpack.c.b16 %v681, %v679
        %v708 = vpack.c.b16 %v684, %v682
        %v709 = vpack.c.b16 %v685, %v683
        %v710 = vpack.c.b16 %v688, %v686
        %v711 = vpack.c.b16 %v689, %v687
        %v712 = vpack.c.b16 %v692, %v690
        %v713 = vpack.c.b16 %v693, %v691
        %v714 = vpack.c.b16 %v696, %v694
        %v715 = vpack.c.b16 %v697, %v695
        %v716 = vpack.c.b16 %v700, %v698
        %v717 = vpack.c.b16 %v701, %v699
        %734 = vmatprep.subr.bf16.mxu0 %v703
        %735 = vmatpush1.bf16.msra.mxu0 %v702
        %736 = vmatprep.subr.bf16.mxu0 %v705
        %737 = vmatpush1.bf16.msra.mxu0 %v704
        %738 = vmatprep.subr.bf16.mxu0 %v707
        %739 = vmatpush1.bf16.msra.mxu0 %v706
        %740 = vmatprep.subr.bf16.mxu0 %v709
        %741 = vmatpush1.bf16.msra.mxu0 %v708
        %742 = vmatprep.subr.bf16.mxu0 %v711
        %743 = vmatpush1.bf16.msra.mxu0 %v710
        %744 = vmatprep.subr.bf16.mxu0 %v713
        %745 = vmatpush1.bf16.msra.mxu0 %v712
        %746 = vmatprep.subr.bf16.mxu0 %v715
        %747 = vmatpush1.bf16.msra.mxu0 %v714
        %748 = vmatprep.subr.bf16.mxu0 %v717
        %749 = vmatpush1.bf16.msra.mxu0 %v716
        %750 = vmatprep.subr.bf16.mxu0 0
        %751 = vmatpush1.bf16.msra.mxu0 0
        %752 = vmatprep.subr.bf16.mxu0 0
        %753 = vmatpush1.bf16.msra.mxu0 0
        %754 = vmatprep.subr.bf16.mxu0 0
        %755 = vmatpush1.bf16.msra.mxu0 0
        %756 = vmatprep.subr.bf16.mxu0 0
        %757 = vmatpush1.bf16.msra.mxu0 0
        %758 = vmatprep.subr.bf16.mxu0 0
        %759 = vmatpush1.bf16.msra.mxu0 0
        %760 = vmatprep.subr.bf16.mxu0 0
        %761 = vmatpush1.bf16.msra.mxu0 0
        %762 = vmatprep.subr.bf16.mxu0 0
        %763 = vmatpush1.bf16.msra.mxu0 0
        %764 = vmatprep.subr.bf16.mxu0 0
        %765 = vmatpush1.bf16.msra.mxu0 0
        %766 = vmatprep.mubr.bf16.mxu0 0
        %767 = vmatmul.mubr.bf16.gmra.mrb[0].mxu0 %v642
        %v768 = vpop.f32.mrb[0].mxu0
        %v769 = vadd.f32 %v647, %v768
        %v770 = vpop.f32.mrb[0].mxu0
        %v771 = vadd.f32 %v651, %v770
        %v772 = vpop.f32.mrb[0].mxu0
        %v773 = vadd.f32 %v647, %v772
        %v774 = vpop.f32.mrb[0].mxu0
        %v775 = vadd.f32 %v651, %v774
        %776 = vdwg.mxu0
        %v777 = vxor.u32 %v769, 2147483648
        %v778 = vxor.u32 %v773, 2147483648
        %v779 = vmul.f32 %v777, 1.442695
        %v780 = vpow.pop %v779
        %v781 = vmul.f32 %v778, 1.442695
        %v782 = vpow.pop %v781
        %v783 = vadd.f32 %v780, 1.0
        %v784 = vadd.f32 %v782, 1.0
        %v785 = vrcp.pop %v783
        %v786 = vmul.f32 1.0, %v785
        %v787 = vrcp.pop %v784
        %v788 = vmul.f32 1.0, %v787
        %v789 = vmax.f32 %v771, 0.0
        %v790 = vmax.f32 %v775, 0.0
        %v791 = vsub.f32 %v789, %v621
        %v792 = vsub.f32 %v790, %v622
        %v793 = vmul.f32 %v786, %v791
        %v794 = vmul.f32 %v788, %v792
        %v795 = vadd.f32 %v621, %v793
        %v796 = vadd.f32 %v622, %v794
        %v797 = vpack.c.bf16 %v796, %v795
        %v798 = vld [vmem:[#allocation7] sm:$0xf]
        %v799 = vld [vmem:[#allocation7 + $0x4] sm:$0xf]
        %v800 = vld [vmem:[#allocation7 + $0x8] sm:$0xf]
        %v801 = vld [vmem:[#allocation7 + $0xc] sm:$0xf]
        %v802 = vld [vmem:[#allocation7 + $0x10] sm:$0xf]
        %v803 = vld [vmem:[#allocation7 + $0x14] sm:$0xf]
        %v804 = vld [vmem:[#allocation7 + $0x18] sm:$0xf]
        %v805 = vld [vmem:[#allocation7 + $0x1c] sm:$0xf]
        %v806 = vld [vmem:[#allocation7 + $0x20] sm:$0xf]
        %v807 = vld [vmem:[#allocation7 + $0x24] sm:$0xf]
        %v808 = vld [vmem:[#allocation7 + $0x28] sm:$0xf]
        %v809 = vld [vmem:[#allocation7 + $0x2c] sm:$0xf]
        %v810 = vld [vmem:[#allocation7 + $0x30] sm:$0xf]
        %v811 = vld [vmem:[#allocation7 + $0x34] sm:$0xf]
        %v812 = vld [vmem:[#allocation7 + $0x38] sm:$0xf]
        %v813 = vld [vmem:[#allocation7 + $0x3c] sm:$0xf]
        %v814 = vld [vmem:[%s4] sm:$0x1]
        %v816 = vlaneseq
        %v817 = vshrl.u32 %v816, 7
        %v818 = vsub.s32 0, %v817
        %v819 = vrot.slane %v814, %v818
        %v837 = vunpack.c.l.b16 %v798
        %v838 = vunpack.c.l.b16 %v799
        %v839 = vunpack.c.l.b16 %v800
        %v840 = vunpack.c.l.b16 %v801
        %v841 = vunpack.c.l.b16 %v802
        %v842 = vunpack.c.l.b16 %v803
        %v843 = vunpack.c.l.b16 %v804
        %v844 = vunpack.c.l.b16 %v805
        %v845 = vunpack.c.l.b16 %v806
        %v846 = vunpack.c.l.b16 %v807
        %v847 = vunpack.c.l.b16 %v808
        %v848 = vunpack.c.l.b16 %v809
        %v849 = vunpack.c.l.b16 %v810
        %v850 = vunpack.c.l.b16 %v811
        %v851 = vunpack.c.l.b16 %v812
        %v852 = vunpack.c.l.b16 %v813
        %v853 = vpack.c.b16 %v838, %v837
        %v854 = vpack.c.b16 %v840, %v839
        %v855 = vpack.c.b16 %v842, %v841
        %v856 = vpack.c.b16 %v844, %v843
        %v857 = vpack.c.b16 %v846, %v845
        %v858 = vpack.c.b16 %v848, %v847
        %v859 = vpack.c.b16 %v850, %v849
        %v860 = vpack.c.b16 %v852, %v851
        %869 = vmatprep.subr.bf16.mxu0 0
        %870 = vmatpush1.bf16.msra.mxu0 %v853
        %871 = vmatprep.subr.bf16.mxu0 0
        %872 = vmatpush1.bf16.msra.mxu0 %v854
        %873 = vmatprep.subr.bf16.mxu0 0
        %874 = vmatpush1.bf16.msra.mxu0 %v855
        %875 = vmatprep.subr.bf16.mxu0 0
        %876 = vmatpush1.bf16.msra.mxu0 %v856
        %877 = vmatprep.subr.bf16.mxu0 0
        %878 = vmatpush1.bf16.msra.mxu0 %v857
        %879 = vmatprep.subr.bf16.mxu0 0
        %880 = vmatpush1.bf16.msra.mxu0 %v858
        %881 = vmatprep.subr.bf16.mxu0 0
        %882 = vmatpush1.bf16.msra.mxu0 %v859
        %883 = vmatprep.subr.bf16.mxu0 0
        %884 = vmatpush1.bf16.msra.mxu0 %v860
        %885 = vmatprep.subr.bf16.mxu0 0
        %886 = vmatpush1.bf16.msra.mxu0 0
        %887 = vmatprep.subr.bf16.mxu0 0
        %888 = vmatpush1.bf16.msra.mxu0 0
        %889 = vmatprep.subr.bf16.mxu0 0
        %890 = vmatpush1.bf16.msra.mxu0 0
        %891 = vmatprep.subr.bf16.mxu0 0
        %892 = vmatpush1.bf16.msra.mxu0 0
        %893 = vmatprep.subr.bf16.mxu0 0
        %894 = vmatpush1.bf16.msra.mxu0 0
        %895 = vmatprep.subr.bf16.mxu0 0
        %896 = vmatpush1.bf16.msra.mxu0 0
        %897 = vmatprep.subr.bf16.mxu0 0
        %898 = vmatpush1.bf16.msra.mxu0 0
        %899 = vmatprep.subr.bf16.mxu0 0
        %900 = vmatpush1.bf16.msra.mxu0 0
        %901 = vmatprep.mubr.bf16.mxu0 0
        %902 = vmatmul.mubr.bf16.gmra.mrb[0].mxu0 %v797
        %v903 = vpop.f32.mrb[0].mxu0
        %v904 = vadd.f32 %v819, %v903
        %v905 = vpop.f32.mrb[0].mxu0
        %v906 = vpop.f32.mrb[0].mxu0
        %v907 = vadd.f32 %v819, %v906
        %v908 = vpop.f32.mrb[0].mxu0
        %909 = vdwg.mxu0
        %910 = vst [vmem:[%s271] sm:$0xff] %v904
        %911 = vst [vmem:[%s271 + $0x8] sm:$0xff] %v907
        %s912 = sand.u32 %s141, 1
        %s913 = scalar_lea.sflag [#allocation4], %s912
        %s914 = sand.u32 %s141, 1
        %s915 = smul.addr %s914, 16
        %s916 = scalar_lea.vmem [#allocation8], %s915
        // Predicated region
        $region53: #{tpu_custom_call.1} parent=39 // pred_check
          %p917 = pneg %p151
        $region54: #{tpu_custom_call.1} parent=39 // pred_check_branch
          %919 = sbr.rel (%p917) target = $region56
        $region55: #{tpu_custom_call.1} parent=39 // pred_region
          %s920 = smul.u32 2, %s23
          %s922 = ssub.s32 256, 256
          %923 = vsyncadd %s913, %s922
          %s924 = smul.addr %s920, 128
          %s925 = scalar_lea.hbm %s5, %s924
          %s926 = sshll.u32 %s916, 4
          %s927 = int_to_ptr.vmem [resolvable:$true] %s926
          %932 = dma.vmem_to_hbm [thread:$0]  %s927, 256, %s925, %s913, 128, 128, 8
        $region56: #{tpu_custom_call.1} parent=39 // pred_fallthru
          _
      $region40: #{tpu_custom_call.1} parent=5 // pred_fallthru
        _
      %p933 = scmp.le.s32.totalorder 2, %s18
      // Predicated region
      $region57: #{tpu_custom_call.1} parent=5 // pred_check
        %p934 = pneg %p933
      $region58: #{tpu_custom_call.1} parent=5 // pred_check_branch
        %936 = sbr.rel (%p934) target = $region60
      $region59: #{tpu_custom_call.1} parent=5 // pred_region
        %s937 = ssub.s32 %s18, 2
        // Predicated region
        $region61: #{tpu_custom_call.1} parent=59 // pred_check
          %p938 = pneg %p157
        $region62: #{tpu_custom_call.1} parent=59 // pred_check_branch
          %940 = sbr.rel (%p938) target = $region64
        $region63: #{tpu_custom_call.1} parent=59 // pred_region
          %s941 = sand.u32 %s142, 1
          %s942 = scalar_lea.sflag [#allocation4], %s941
          %s943 = sand.u32 %s142, 1
          %s944 = smul.addr %s943, 16
          %s945 = scalar_lea.vmem [#allocation8], %s944
          %946 = dma.done %s942, 256
        $region64: #{tpu_custom_call.1} parent=59 // pred_fallthru
          _
      $region60: #{tpu_custom_call.1} parent=5 // pred_fallthru
        _
    $region6: #{tpu_custom_call.1} parent=1 // loop_footer
      %s22 = sadd.s32 1, %s18
    $region7: #{tpu_custom_call.1} parent=1 // loop_footer_branch
      %17 = sbr.rel target = $region3
    $region8: #{tpu_custom_call.1} parent=1 // loop_exit
      _
    %947 = vsyncpa [#allocation3], 1
    %s948 = scalar_lea.sflag [#allocation3], 1
    %949 = vsyncpa %s948, 1
    %950 = vsyncpa [#allocation6], 1
    %951 = vsyncpa [#allocation4], 1
    %s952 = scalar_lea.sflag [#allocation4], 1
    %953 = vsyncpa %s952, 1

// kernel: tpu_custom_call.1
$region0: #{tpu_custom_call.1}
  #allocation0 [shape = 'u32[]', space=smem, size = 0x4, offset = 0x4, fixed_abs, tag = 'smem constant byte address 0x4 - core index']
  #allocation1 [shape = 'u32[144,128]{1,0:T(1,128)}', space=vmem, size = 0x12000, scoped, tag = 'internal scratch']
  %s0 = inlined_call_operand.hbm [shape: f32[32,128], index: 0, kind: input, shape index: {}]
  %s1 = inlined_call_operand.hbm [shape: bf16[3,128,256], index: 1, kind: input, shape index: {}]
  %s2 = inlined_call_operand.vmem [shape: f32[3,1,256], index: 2, kind: input, shape index: {}]
  %s3 = inlined_call_operand.hbm [shape: bf16[128,128], index: 3, kind: input, shape index: {}]
  %s4 = inlined_call_operand.vmem [shape: f32[1,128], index: 4, kind: input, shape index: {}]
  %s5 = inlined_call_operand.hbm [shape: f32[32,128], index: 5, kind: output, shape index: {}]
  %s6 = sld [smem:[#allocation0]]
  $region65: #{tpu_custom_call.1} parent=0
    _
  %s8 = ssub.s32 1, %s6
  %s9 = scalar_select 0, %s8, %s6
  $region1: #{tpu_custom_call.1} parent=0
    #allocation2 [shape = 'u8[16384]{0}', space=vmem, size = 0x4000, scoped, tag = 'input window, operand 0']
    #allocation3 [shape = 's32[2]{0}', space=sflag, size = 0x8, scoped, tag = 'scoped memory for tpu_custom_call.1']
    #allocation4 [shape = 's32[2]{0}', space=sflag, size = 0x8, scoped, tag = 'scoped memory for tpu_custom_call.1']
    #allocation5 [shape = 'u8[196608]{0}', space=vmem, size = 0x30000, scoped, tag = 'input window, operand 1, single buffered']
    #allocation6 [shape = 's32[1]{0}', space=sflag, size = 0x4, scoped, tag = 'scoped memory for tpu_custom_call.1']
    #allocation7 [shape = 'u8[32768]{0}', space=vmem, size = 0x8000, scoped, tag = 'input window, operand 3, single buffered']
    #allocation8 [shape = 'u8[16384]{0}', space=vmem, size = 0x4000, scoped, tag = 'output window, operand 0']
    %10 = vsyncpa [#allocation3], 0
    %s11 = scalar_lea.sflag [#allocation3], 1
    %12 = vsyncpa %s11, 0
    %13 = vsyncpa [#allocation6], 0
    %14 = vsyncpa [#allocation4], 0
    %s15 = scalar_lea.sflag [#allocation4], 1
    %16 = vsyncpa %s15, 0
    loop: start=0, step=1, limit=4
    $region2: #{tpu_custom_call.1} parent=1 // loop_pre_header
      _
    $region3: #{tpu_custom_call.1} parent=1 // loop_header
      %s18 = sphi 0, %s22
      %p19 = scmp.ge.s32.totalorder %s18, 4
      %s28 = sphi 0, %s30
      %s31 = sphi 0, %s28
      %s32 = sphi 0, %s31
      %s48 = sphi 0, %s32
      %s52 = sphi 0, %s52
      %s54 = sphi 0, %s52
      %s55 = sphi 0, %s54
      %s69 = sphi 0, %s55
      %s73 = sphi 0, %s73
      %s75 = sphi 0, %s73
      %s76 = sphi 0, %s75
      %s90 = sphi 0, %s76
      %s94 = sphi 0, %s94
      %s96 = sphi 0, %s94
      %s97 = sphi 0, %s96
      %s111 = sphi 0, %s97
      %s115 = sphi 0, %s115
      %s117 = sphi 0, %s115
      %s118 = sphi 0, %s117
      %s132 = sphi 0, %s118
      %s138 = sphi 0, %s140
      %s141 = sphi 0, %s138
      %s142 = sphi 0, %s141
      %s158 = sphi 0, %s142
    $region4: #{tpu_custom_call.1} parent=1 // loop_header_branch
      %21 = sbr.rel (%p19) target = $region8
    $region5: #{tpu_custom_call.1} parent=1 // loop_body
      %s23 = ssub.s32 %s18, 1
      %s24 = ssub.s32 %s18, 2
      %s25 = sadd.s32 %s18, 1
      %s26 = ssub.s32 %s18, %s25
      %p27 = scmp.eq.s32.totalorder %s26, 0
      %s29 = sadd.s32 %s28, 1
      %s30 = scalar_select %p27, %s28, %s29
      %p33 = pneg %p27
      %p34 = scmp.eq.s32.totalorder %s18, 1
      %p35 = por %p33, %p34
      %p36 = scmp.ne.s32.totalorder %s28, %s31
      %p37 = scmp.eq.s32.totalorder %s18, 0
      %p38 = por %p36, %p37
      %p39 = scmp.ne.s32.totalorder %s28, %s31
      %p40 = scmp.eq.s32.totalorder %s23, 1
      %p41 = por %p39, %p40
      %p42 = scmp.ne.s32.totalorder %s31, %s32
      %p43 = scmp.eq.s32.totalorder %s23, 0
      %p44 = por %p42, %p43
      %p45 = scmp.ne.s32.totalorder %s31, %s32
      %p46 = scmp.eq.s32.totalorder %s24, 1
      %p47 = por %p45, %p46
      %p49 = scmp.ne.s32.totalorder %s32, %s48
      %p50 = scmp.eq.s32.totalorder %s24, 0
      %p51 = por %p49, %p50
      %s53 = sadd.s32 %s52, 1
      %p56 = scmp.eq.s32.totalorder %s18, 1
      %p57 = scmp.ne.s32.totalorder %s52, %s54
      %p58 = scmp.eq.s32.totalorder %s18, 0
      %p59 = por %p57, %p58
      %p60 = scmp.ne.s32.totalorder %s52, %s54
      %p61 = scmp.eq.s32.totalorder %s23, 1
      %p62 = por %p60, %p61
      %p63 = scmp.ne.s32.totalorder %s54, %s55
      %p64 = scmp.eq.s32.totalorder %s23, 0
      %p65 = por %p63, %p64
      %p66 = scmp.ne.s32.totalorder %s54, %s55
      %p67 = scmp.eq.s32.totalorder %s24, 1
      %p68 = por %p66, %p67
      %p70 = scmp.ne.s32.totalorder %s55, %s69
      %p71 = scmp.eq.s32.totalorder %s24, 0
      %p72 = por %p70, %p71
      %s74 = sadd.s32 %s73, 1
      %p77 = scmp.eq.s32.totalorder %s18, 1
      %p78 = scmp.ne.s32.totalorder %s73, %s75
      %p79 = scmp.eq.s32.totalorder %s18, 0
      %p80 = por %p78, %p79
      %p81 = scmp.ne.s32.totalorder %s73, %s75
      %p82 = scmp.eq.s32.totalorder %s23, 1
      %p83 = por %p81, %p82
      %p84 = scmp.ne.s32.totalorder %s75, %s76
      %p85 = scmp.eq.s32.totalorder %s23, 0
      %p86 = por %p84, %p85
      %p87 = scmp.ne.s32.totalorder %s75, %s76
      %p88 = scmp.eq.s32.totalorder %s24, 1
      %p89 = por %p87, %p88
      %p91 = scmp.ne.s32.totalorder %s76, %s90
      %p92 = scmp.eq.s32.totalorder %s24, 0
      %p93 = por %p91, %p92
      %s95 = sadd.s32 %s94, 1
      %p98 = scmp.eq.s32.totalorder %s18, 1
      %p99 = scmp.ne.s32.totalorder %s94, %s96
      %p100 = scmp.eq.s32.totalorder %s18, 0
      %p101 = por %p99, %p100
      %p102 = scmp.ne.s32.totalorder %s94, %s96
      %p103 = scmp.eq.s32.totalorder %s23, 1
      %p104 = por %p102, %p103
      %p105 = scmp.ne.s32.totalorder %s96, %s97
      %p106 = scmp.eq.s32.totalorder %s23, 0
      %p107 = por %p105, %p106
      %p108 = scmp.ne.s32.totalorder %s96, %s97
      %p109 = scmp.eq.s32.totalorder %s24, 1
      %p110 = por %p108, %p109
      %p112 = scmp.ne.s32.totalorder %s97, %s111
      %p113 = scmp.eq.s32.totalorder %s24, 0
      %p114 = por %p112, %p113
      %s116 = sadd.s32 %s115, 1
      %p119 = scmp.eq.s32.totalorder %s18, 1
      %p120 = scmp.ne.s32.totalorder %s115, %s117
      %p121 = scmp.eq.s32.totalorder %s18, 0
      %p122 = por %p120, %p121
      %p123 = scmp.ne.s32.totalorder %s115, %s117
      %p124 = scmp.eq.s32.totalorder %s23, 1
      %p125 = por %p123, %p124
      %p126 = scmp.ne.s32.totalorder %s117, %s118
      %p127 = scmp.eq.s32.totalorder %s23, 0
      %p128 = por %p126, %p127
      %p129 = scmp.ne.s32.totalorder %s117, %s118
      %p130 = scmp.eq.s32.totalorder %s24, 1
      %p131 = por %p129, %p130
      %p133 = scmp.ne.s32.totalorder %s118, %s132
      %p134 = scmp.eq.s32.totalorder %s24, 0
      %p135 = por %p133, %p134
      %s136 = ssub.s32 %s18, %s25
      %p137 = scmp.eq.s32.totalorder %s136, 0
      %s139 = sadd.s32 %s138, 1
      %s140 = scalar_select %p137, %s138, %s139
      %p143 = pneg %p137
      %p144 = scmp.eq.s32.totalorder %s18, 1
      %p145 = por %p143, %p144
      %p146 = scmp.ne.s32.totalorder %s138, %s141
      %p147 = scmp.eq.s32.totalorder %s18, 0
      %p148 = por %p146, %p147
      %p149 = scmp.ne.s32.totalorder %s138, %s141
      %p150 = scmp.eq.s32.totalorder %s23, 1
      %p151 = por %p149, %p150
      %p152 = scmp.ne.s32.totalorder %s141, %s142
      %p153 = scmp.eq.s32.totalorder %s23, 0
      %p154 = por %p152, %p153
      %p155 = scmp.ne.s32.totalorder %s141, %s142
      %p156 = scmp.eq.s32.totalorder %s24, 1
      %p157 = por %p155, %p156
      %p159 = scmp.ne.s32.totalorder %s142, %s158
      %p160 = scmp.eq.s32.totalorder %s24, 0
      %p161 = por %p159, %p160
      %p162 = scmp.le.s32.totalorder 1, %s18
      %p163 = scmp.lt.s32.totalorder %s18, 3
      %p164 = pnand %p162, %p163
      %p165 = pneg %p164
      // Predicated region
      $region9: #{tpu_custom_call.1} parent=5 // pred_check
        _
      $region10: #{tpu_custom_call.1} parent=5 // pred_check_branch
        %167 = sbr.rel (%p164) target = $region12
      $region11: #{tpu_custom_call.1} parent=5 // pred_region
        %s168 = ssub.s32 %s18, 1
        // Predicated region
        $region13: #{tpu_custom_call.1} parent=11 // pred_check
          %p169 = pneg %p65
        $region14: #{tpu_custom_call.1} parent=11 // pred_check_branch
          %171 = sbr.rel (%p169) target = $region16
        $region15: #{tpu_custom_call.1} parent=11 // pred_region
          %s173 = ssub.s32 6144, 6144
          %174 = vsyncadd [#allocation6], %s173
          %s175 = sshll.u32 [#allocation5], 4
          %s176 = int_to_ptr.vmem [resolvable:$true] %s175
          %181 = dma.hbm_to_vmem [thread:$0]  %s1, 6144, %s176, [#allocation6], 128, 128, 8
        $region16: #{tpu_custom_call.1} parent=11 // pred_fallthru
          _
        // Predicated region
        $region17: #{tpu_custom_call.1} parent=11 // pred_check
          %p182 = pneg %p86
        $region18: #{tpu_custom_call.1} parent=11 // pred_check_branch
          %184 = sbr.rel (%p182) target = $region20
        $region19: #{tpu_custom_call.1} parent=11 // pred_region
          _
        $region20: #{tpu_custom_call.1} parent=11 // pred_fallthru
          _
        // Predicated region
        $region21: #{tpu_custom_call.1} parent=11 // pred_check
          %p185 = pneg %p107
        $region22: #{tpu_custom_call.1} parent=11 // pred_check_branch
          %187 = sbr.rel (%p185) target = $region24
        $region23: #{tpu_custom_call.1} parent=11 // pred_region
          %s189 = ssub.s32 1024, 1024
          %190 = vsyncadd [#allocation6], %s189
          %s191 = sshll.u32 [#allocation7], 4
          %s192 = int_to_ptr.vmem [resolvable:$true] %s191
          %197 = dma.hbm_to_vmem [thread:$0]  %s3, 1024, %s192, [#allocation6], 64, 64, 4
        $region24: #{tpu_custom_call.1} parent=11 // pred_fallthru
          _
        // Predicated region
        $region25: #{tpu_custom_call.1} parent=11 // pred_check
          %p198 = pneg %p128
        $region26: #{tpu_custom_call.1} parent=11 // pred_check_branch
          %200 = sbr.rel (%p198) target = $region28
        $region27: #{tpu_custom_call.1} parent=11 // pred_region
          _
        $region28: #{tpu_custom_call.1} parent=11 // pred_fallthru
          _
      $region12: #{tpu_custom_call.1} parent=5 // pred_fallthru
        _
      %p201 = scmp.lt.s32.totalorder %s18, 2
      // Predicated region
      $region29: #{tpu_custom_call.1} parent=5 // pred_check
        %p202 = pneg %p201
      $region30: #{tpu_custom_call.1} parent=5 // pred_check_branch
        %204 = sbr.rel (%p202) target = $region32
      $region31: #{tpu_custom_call.1} parent=5 // pred_region
        // Predicated region
        $region33: #{tpu_custom_call.1} parent=31 // pred_check
          %p205 = pneg %p38
        $region34: #{tpu_custom_call.1} parent=31 // pred_check_branch
          %207 = sbr.rel (%p205) target = $region36
        $region35: #{tpu_custom_call.1} parent=31 // pred_region
          %s208 = sand.u32 %s28, 1
          %s209 = scalar_lea.sflag [#allocation3], %s208
          %s210 = sand.u32 %s28, 1
          %s211 = smul.addr %s210, 16
          %s212 = scalar_lea.vmem [#allocation2], %s211
          %s213 = smul.u32 2, %s18
          %s215 = ssub.s32 256, 256
          %216 = vsyncadd %s209, %s215
          %s217 = smul.addr %s213, 128
          %s218 = scalar_lea.hbm %s0, %s217
          %s219 = sshll.u32 %s212, 4
          %s220 = int_to_ptr.vmem [resolvable:$true] %s219
          %225 = dma.hbm_to_vmem [thread:$0]  %s218, 256, %s220, %s209, 128, 128, 8
        $region36: #{tpu_custom_call.1} parent=31 // pred_fallthru
          _
      $region32: #{tpu_custom_call.1} parent=5 // pred_fallthru
        _
      %p226 = scmp.le.s32.totalorder 1, %s18
      %p227 = scmp.lt.s32.totalorder %s18, 3
      %p228 = pnand %p226, %p227
      %p229 = pneg %p228
      // Predicated region
      $region37: #{tpu_custom_call.1} parent=5 // pred_check
        _
      $region38: #{tpu_custom_call.1} parent=5 // pred_check_branch
        %231 = sbr.rel (%p228) target = $region40
      $region39: #{tpu_custom_call.1} parent=5 // pred_region
        %s232 = ssub.s32 %s18, 1
        %s233 = sand.u32 %s31, 1
        %s234 = scalar_lea.sflag [#allocation3], %s233
        %s235 = sand.u32 %s31, 1
        %s236 = smul.addr %s235, 16
        %s237 = scalar_lea.vmem [#allocation2], %s236
        // Predicated region
        $region41: #{tpu_custom_call.1} parent=39 // pred_check
          %p238 = pneg %p44
        $region42: #{tpu_custom_call.1} parent=39 // pred_check_branch
          %240 = sbr.rel (%p238) target = $region44
        $region43: #{tpu_custom_call.1} parent=39 // pred_region
          %241 = dma.done %s234, 256
        $region44: #{tpu_custom_call.1} parent=39 // pred_fallthru
          _
        // Predicated region
        $region45: #{tpu_custom_call.1} parent=39 // pred_check
          %p242 = pneg %p65
        $region46: #{tpu_custom_call.1} parent=39 // pred_check_branch
          %244 = sbr.rel (%p242) target = $region48
        $region47: #{tpu_custom_call.1} parent=39 // pred_region
          %245 = dma.done [#allocation6], 6144
        $region48: #{tpu_custom_call.1} parent=39 // pred_fallthru
          _
        // Predicated region
        $region49: #{tpu_custom_call.1} parent=39 // pred_check
          %p246 = pneg %p107
        $region50: #{tpu_custom_call.1} parent=39 // pred_check_branch
          %248 = sbr.rel (%p246) target = $region52
        $region51: #{tpu_custom_call.1} parent=39 // pred_region
          %249 = dma.done [#allocation6], 1024
        $region52: #{tpu_custom_call.1} parent=39 // pred_fallthru
          _
        %s250 = sand.u32 %s31, 1
        %s251 = scalar_lea.sflag [#allocation3], %s250
        %s252 = sand.u32 %s31, 1
        %s253 = smul.addr %s252, 16
        %s254 = scalar_lea.vmem [#allocation2], %s253
        %p255 = pneg %p44
        %p256 = pneg %p41
        %p257 = pneg %p65
        %p258 = pneg %p62
        %p259 = pneg %p86
        %p260 = pneg %p83
        %p261 = pneg %p107
        %p262 = pneg %p104
        %p263 = pneg %p128
        %p264 = pneg %p125
        %p265 = pneg %p154
        %p266 = pneg %p151
        %s267 = sand.u32 %s141, 1
        %s268 = scalar_lea.sflag [#allocation4], %s267
        %s269 = sand.u32 %s141, 1
        %s270 = smul.addr %s269, 16
        %s271 = scalar_lea.vmem [#allocation8], %s270
        %s272 = smul.u32 2, %s23
        %s273 = smul.u32 2, %s23
        %v275 = vld [vmem:[%s237] sm:$0xff]
        %v276 = vld [vmem:[%s237 + $0x8] sm:$0xff]
        %v277 = vld [vmem:[#allocation5] sm:$0xff]
        %v278 = vld [vmem:[#allocation5 + $0x8] sm:$0xff]
        %v279 = vld [vmem:[#allocation5 + $0x10] sm:$0xff]
        %v280 = vld [vmem:[#allocation5 + $0x18] sm:$0xff]
        %v281 = vld [vmem:[#allocation5 + $0x20] sm:$0xff]
        %v282 = vld [vmem:[#allocation5 + $0x28] sm:$0xff]
        %v283 = vld [vmem:[#allocation5 + $0x30] sm:$0xff]
        %v284 = vld [vmem:[#allocation5 + $0x38] sm:$0xff]
        %v285 = vld [vmem:[#allocation5 + $0x40] sm:$0xff]
        %v286 = vld [vmem:[#allocation5 + $0x48] sm:$0xff]
        %v287 = vld [vmem:[#allocation5 + $0x50] sm:$0xff]
        %v288 = vld [vmem:[#allocation5 + $0x58] sm:$0xff]
        %v289 = vld [vmem:[#allocation5 + $0x60] sm:$0xff]
        %v290 = vld [vmem:[#allocation5 + $0x68] sm:$0xff]
        %v291 = vld [vmem:[#allocation5 + $0x70] sm:$0xff]
        %v292 = vld [vmem:[#allocation5 + $0x78] sm:$0xff]
        %v293 = vld [vmem:[%s2] sm:$0x3]
        %v294 = vpack.c.bf16 %v276, %v275
        %v296 = vlaneseq
        %v297 = vshrl.u32 %v296, 7
        %v298 = vsub.s32 0, %v297
        %v299 = vrot.slane %v293, %v298
        %v300 = vlaneseq
        %v301 = vshrl.u32 %v300, 7
        %v302 = vsub.s32 1, %v301
        %v303 = vrot.slane %v293, %v302
        %v322 = vunpack.c.l.b16 %v277
        %v323 = vunpack.c.h.b16 %v277
        %v324 = vunpack.c.l.b16 %v278
        %v325 = vunpack.c.h.b16 %v278
        %v326 = vunpack.c.l.b16 %v279
        %v327 = vunpack.c.h.b16 %v279
        %v328 = vunpack.c.l.b16 %v280
        %v329 = vunpack.c.h.b16 %v280
        %v330 = vunpack.c.l.b16 %v281
        %v331 = vunpack.c.h.b16 %v281
        %v332 = vunpack.c.l.b16 %v282
        %v333 = vunpack.c.h.b16 %v282
        %v334 = vunpack.c.l.b16 %v283
        %v335 = vunpack.c.h.b16 %v283
        %v336 = vunpack.c.l.b16 %v284
        %v337 = vunpack.c.h.b16 %v284
        %v338 = vunpack.c.l.b16 %v285
        %v339 = vunpack.c.h.b16 %v285
        %v340 = vunpack.c.l.b16 %v286
        %v341 = vunpack.c.h.b16 %v286
        %v342 = vunpack.c.l.b16 %v287
        %v343 = vunpack.c.h.b16 %v287
        %v344 = vunpack.c.l.b16 %v288
        %v345 = vunpack.c.h.b16 %v288
        %v346 = vunpack.c.l.b16 %v289
        %v347 = vunpack.c.h.b16 %v289
        %v348 = vunpack.c.l.b16 %v290
        %v349 = vunpack.c.h.b16 %v290
        %v350 = vunpack.c.l.b16 %v291
        %v351 = vunpack.c.h.b16 %v291
        %v352 = vunpack.c.l.b16 %v292
        %v353 = vunpack.c.h.b16 %v292
        %v354 = vpack.c.b16 %v324, %v322
        %v355 = vpack.c.b16 %v325, %v323
        %v356 = vpack.c.b16 %v328, %v326
        %v357 = vpack.c.b16 %v329, %v327
        %v358 = vpack.c.b16 %v332, %v330
        %v359 = vpack.c.b16 %v333, %v331
        %v360 = vpack.c.b16 %v336, %v334
        %v361 = vpack.c.b16 %v337, %v335
        %v362 = vpack.c.b16 %v340, %v338
        %v363 = vpack.c.b16 %v341, %v339
        %v364 = vpack.c.b16 %v344, %v342
        %v365 = vpack.c.b16 %v345, %v343
        %v366 = vpack.c.b16 %v348, %v346
        %v367 = vpack.c.b16 %v349, %v347
        %v368 = vpack.c.b16 %v352, %v350
        %v369 = vpack.c.b16 %v353, %v351
        %386 = vmatprep.subr.bf16.mxu0 %v355
        %387 = vmatpush1.bf16.msra.mxu0 %v354
        %388 = vmatprep.subr.bf16.mxu0 %v357
        %389 = vmatpush1.bf16.msra.mxu0 %v356
        %390 = vmatprep.subr.bf16.mxu0 %v359
        %391 = vmatpush1.bf16.msra.mxu0 %v358
        %392 = vmatprep.subr.bf16.mxu0 %v361
        %393 = vmatpush1.bf16.msra.mxu0 %v360
        %394 = vmatprep.subr.bf16.mxu0 %v363
        %395 = vmatpush1.bf16.msra.mxu0 %v362
        %396 = vmatprep.subr.bf16.mxu0 %v365
        %397 = vmatpush1.bf16.msra.mxu0 %v364
        %398 = vmatprep.subr.bf16.mxu0 %v367
        %399 = vmatpush1.bf16.msra.mxu0 %v366
        %400 = vmatprep.subr.bf16.mxu0 %v369
        %401 = vmatpush1.bf16.msra.mxu0 %v368
        %402 = vmatprep.subr.bf16.mxu0 0
        %403 = vmatpush1.bf16.msra.mxu0 0
        %404 = vmatprep.subr.bf16.mxu0 0
        %405 = vmatpush1.bf16.msra.mxu0 0
        %406 = vmatprep.subr.bf16.mxu0 0
        %407 = vmatpush1.bf16.msra.mxu0 0
        %408 = vmatprep.subr.bf16.mxu0 0
        %409 = vmatpush1.bf16.msra.mxu0 0
        %410 = vmatprep.subr.bf16.mxu0 0
        %411 = vmatpush1.bf16.msra.mxu0 0
        %412 = vmatprep.subr.bf16.mxu0 0
        %413 = vmatpush1.bf16.msra.mxu0 0
        %414 = vmatprep.subr.bf16.mxu0 0
        %415 = vmatpush1.bf16.msra.mxu0 0
        %416 = vmatprep.subr.bf16.mxu0 0
        %417 = vmatpush1.bf16.msra.mxu0 0
        %418 = vmatprep.mubr.bf16.mxu0 0
        %419 = vmatmul.mubr.bf16.gmra.mrb[0].mxu0 %v294
        %v420 = vpop.f32.mrb[0].mxu0
        %v421 = vadd.f32 %v299, %v420
        %v422 = vpop.f32.mrb[0].mxu0
        %v423 = vadd.f32 %v303, %v422
        %v424 = vpop.f32.mrb[0].mxu0
        %v425 = vadd.f32 %v299, %v424
        %v426 = vpop.f32.mrb[0].mxu0
        %v427 = vadd.f32 %v303, %v426
        %428 = vdwg.mxu0
        %v429 = vxor.u32 %v421, 2147483648
        %v430 = vxor.u32 %v425, 2147483648
        %v431 = vmul.f32 %v429, 1.442695
        %v432 = vpow.pop %v431
        %v433 = vmul.f32 %v430, 1.442695
        %v434 = vpow.pop %v433
        %v435 = vadd.f32 %v432, 1.0
        %v436 = vadd.f32 %v434, 1.0
        %v437 = vrcp.pop %v435
        %v438 = vmul.f32 1.0, %v437
        %v439 = vrcp.pop %v436
        %v440 = vmul.f32 1.0, %v439
        %v441 = vmax.f32 %v423, 0.0
        %v442 = vmax.f32 %v427, 0.0
        %v443 = vsub.f32 %v441, %v275
        %v444 = vsub.f32 %v442, %v276
        %v445 = vmul.f32 %v438, %v443
        %v446 = vmul.f32 %v440, %v444
        %v447 = vadd.f32 %v275, %v445
        %v448 = vadd.f32 %v276, %v446
        %s449 = scalar_lea.vmem [#allocation5], 128
        %v450 = vld [vmem:[%s449] sm:$0xff]
        %v451 = vld [vmem:[%s449 + $0x8] sm:$0xff]
        %v452 = vld [vmem:[%s449 + $0x10] sm:$0xff]
        %v453 = vld [vmem:[%s449 + $0x18] sm:$0xff]
        %v454 = vld [vmem:[%s449 + $0x20] sm:$0xff]
        %v455 = vld [vmem:[%s449 + $0x28] sm:$0xff]
        %v456 = vld [vmem:[%s449 + $0x30] sm:$0xff]
        %v457 = vld [vmem:[%s449 + $0x38] sm:$0xff]
        %v458 = vld [vmem:[%s449 + $0x40] sm:$0xff]
        %v459 = vld [vmem:[%s449 + $0x48] sm:$0xff]
        %v460 = vld [vmem:[%s449 + $0x50] sm:$0xff]
        %v461 = vld [vmem:[%s449 + $0x58] sm:$0xff]
        %v462 = vld [vmem:[%s449 + $0x60] sm:$0xff]
        %v463 = vld [vmem:[%s449 + $0x68] sm:$0xff]
        %v464 = vld [vmem:[%s449 + $0x70] sm:$0xff]
        %v465 = vld [vmem:[%s449 + $0x78] sm:$0xff]
        %s466 = scalar_lea.vmem %s2, 2
        %v467 = vld [vmem:[%s466] sm:$0x3]
        %v468 = vpack.c.bf16 %v448, %v447
        %v470 = vlaneseq
        %v471 = vshrl.u32 %v470, 7
        %v472 = vsub.s32 0, %v471
        %v473 = vrot.slane %v467, %v472
        %v474 = vlaneseq
        %v475 = vshrl.u32 %v474, 7
        %v476 = vsub.s32 1, %v475
        %v477 = vrot.slane %v467, %v476
        %v496 = vunpack.c.l.b16 %v450
        %v497 = vunpack.c.h.b16 %v450
        %v498 = vunpack.c.l.b16 %v451
        %v499 = vunpack.c.h.b16 %v451
        %v500 = vunpack.c.l.b16 %v452
        %v501 = vunpack.c.h.b16 %v452
        %v502 = vunpack.c.l.b16 %v453
        %v503 = vunpack.c.h.b16 %v453
        %v504 = vunpack.c.l.b16 %v454
        %v505 = vunpack.c.h.b16 %v454
        %v506 = vunpack.c.l.b16 %v455
        %v507 = vunpack.c.h.b16 %v455
        %v508 = vunpack.c.l.b16 %v456
        %v509 = vunpack.c.h.b16 %v456
        %v510 = vunpack.c.l.b16 %v457
        %v511 = vunpack.c.h.b16 %v457
        %v512 = vunpack.c.l.b16 %v458
        %v513 = vunpack.c.h.b16 %v458
        %v514 = vunpack.c.l.b16 %v459
        %v515 = vunpack.c.h.b16 %v459
        %v516 = vunpack.c.l.b16 %v460
        %v517 = vunpack.c.h.b16 %v460
        %v518 = vunpack.c.l.b16 %v461
        %v519 = vunpack.c.h.b16 %v461
        %v520 = vunpack.c.l.b16 %v462
        %v521 = vunpack.c.h.b16 %v462
        %v522 = vunpack.c.l.b16 %v463
        %v523 = vunpack.c.h.b16 %v463
        %v524 = vunpack.c.l.b16 %v464
        %v525 = vunpack.c.h.b16 %v464
        %v526 = vunpack.c.l.b16 %v465
        %v527 = vunpack.c.h.b16 %v465
        %v528 = vpack.c.b16 %v498, %v496
        %v529 = vpack.c.b16 %v499, %v497
        %v530 = vpack.c.b16 %v502, %v500
        %v531 = vpack.c.b16 %v503, %v501
        %v532 = vpack.c.b16 %v506, %v504
        %v533 = vpack.c.b16 %v507, %v505
        %v534 = vpack.c.b16 %v510, %v508
        %v535 = vpack.c.b16 %v511, %v509
        %v536 = vpack.c.b16 %v514, %v512
        %v537 = vpack.c.b16 %v515, %v513
        %v538 = vpack.c.b16 %v518, %v516
        %v539 = vpack.c.b16 %v519, %v517
        %v540 = vpack.c.b16 %v522, %v520
        %v541 = vpack.c.b16 %v523, %v521
        %v542 = vpack.c.b16 %v526, %v524
        %v543 = vpack.c.b16 %v527, %v525
        %560 = vmatprep.subr.bf16.mxu0 %v529
        %561 = vmatpush1.bf16.msra.mxu0 %v528
        %562 = vmatprep.subr.bf16.mxu0 %v531
        %563 = vmatpush1.bf16.msra.mxu0 %v530
        %564 = vmatprep.subr.bf16.mxu0 %v533
        %565 = vmatpush1.bf16.msra.mxu0 %v532
        %566 = vmatprep.subr.bf16.mxu0 %v535
        %567 = vmatpush1.bf16.msra.mxu0 %v534
        %568 = vmatprep.subr.bf16.mxu0 %v537
        %569 = vmatpush1.bf16.msra.mxu0 %v536
        %570 = vmatprep.subr.bf16.mxu0 %v539
        %571 = vmatpush1.bf16.msra.mxu0 %v538
        %572 = vmatprep.subr.bf16.mxu0 %v541
        %573 = vmatpush1.bf16.msra.mxu0 %v540
        %574 = vmatprep.subr.bf16.mxu0 %v543
        %575 = vmatpush1.bf16.msra.mxu0 %v542
        %576 = vmatprep.subr.bf16.mxu0 0
        %577 = vmatpush1.bf16.msra.mxu0 0
        %578 = vmatprep.subr.bf16.mxu0 0
        %579 = vmatpush1.bf16.msra.mxu0 0
        %580 = vmatprep.subr.bf16.mxu0 0
        %581 = vmatpush1.bf16.msra.mxu0 0
        %582 = vmatprep.subr.bf16.mxu0 0
        %583 = vmatpush1.bf16.msra.mxu0 0
        %584 = vmatprep.subr.bf16.mxu0 0
        %585 = vmatpush1.bf16.msra.mxu0 0
        %586 = vmatprep.subr.bf16.mxu0 0
        %587 = vmatpush1.bf16.msra.mxu0 0
        %588 = vmatprep.subr.bf16.mxu0 0
        %589 = vmatpush1.bf16.msra.mxu0 0
        %590 = vmatprep.subr.bf16.mxu0 0
        %591 = vmatpush1.bf16.msra.mxu0 0
        %592 = vmatprep.mubr.bf16.mxu0 0
        %593 = vmatmul.mubr.bf16.gmra.mrb[0].mxu0 %v468
        %v594 = vpop.f32.mrb[0].mxu0
        %v595 = vadd.f32 %v473, %v594
        %v596 = vpop.f32.mrb[0].mxu0
        %v597 = vadd.f32 %v477, %v596
        %v598 = vpop.f32.mrb[0].mxu0
        %v599 = vadd.f32 %v473, %v598
        %v600 = vpop.f32.mrb[0].mxu0
        %v601 = vadd.f32 %v477, %v600
        %602 = vdwg.mxu0
        %v603 = vxor.u32 %v595, 2147483648
        %v604 = vxor.u32 %v599, 2147483648
        %v605 = vmul.f32 %v603, 1.442695
        %v606 = vpow.pop %v605
        %v607 = vmul.f32 %v604, 1.442695
        %v608 = vpow.pop %v607
        %v609 = vadd.f32 %v606, 1.0
        %v610 = vadd.f32 %v608, 1.0
        %v611 = vrcp.pop %v609
        %v612 = vmul.f32 1.0, %v611
        %v613 = vrcp.pop %v610
        %v614 = vmul.f32 1.0, %v613
        %v615 = vmax.f32 %v597, 0.0
        %v616 = vmax.f32 %v601, 0.0
        %v617 = vsub.f32 %v615, %v447
        %v618 = vsub.f32 %v616, %v448
        %v619 = vmul.f32 %v612, %v617
        %v620 = vmul.f32 %v614, %v618
        %v621 = vadd.f32 %v447, %v619
        %v622 = vadd.f32 %v448, %v620
        %s623 = scalar_lea.vmem [#allocation5], 256
        %v624 = vld [vmem:[%s623] sm:$0xff]
        %v625 = vld [vmem:[%s623 + $0x8] sm:$0xff]
        %v626 = vld [vmem:[%s623 + $0x10] sm:$0xff]
        %v627 = vld [vmem:[%s623 + $0x18] sm:$0xff]
        %v628 = vld [vmem:[%s623 + $0x20] sm:$0xff]
        %v629 = vld [vmem:[%s623 + $0x28] sm:$0xff]
        %v630 = vld [vmem:[%s623 + $0x30] sm:$0xff]
        %v631 = vld [vmem:[%s623 + $0x38] sm:$0xff]
        %v632 = vld [vmem:[%s623 + $0x40] sm:$0xff]
        %v633 = vld [vmem:[%s623 + $0x48] sm:$0xff]
        %v634 = vld [vmem:[%s623 + $0x50] sm:$0xff]
        %v635 = vld [vmem:[%s623 + $0x58] sm:$0xff]
        %v636 = vld [vmem:[%s623 + $0x60] sm:$0xff]
        %v637 = vld [vmem:[%s623 + $0x68] sm:$0xff]
        %v638 = vld [vmem:[%s623 + $0x70] sm:$0xff]
        %v639 = vld [vmem:[%s623 + $0x78] sm:$0xff]
        %s640 = scalar_lea.vmem %s2, 4
        %v641 = vld [vmem:[%s640] sm:$0x3]
        %v642 = vpack.c.bf16 %v622, %v621
        %v644 = vlaneseq
        %v645 = vshrl.u32 %v644, 7
        %v646 = vsub.s32 0, %v645
        %v647 = vrot.slane %v641, %v646
        %v648 = vlaneseq
        %v649 = vshrl.u32 %v648, 7
        %v650 = vsub.s32 1, %v649
        %v651 = vrot.slane %v641, %v650
        %v670 = vunpack.c.l.b16 %v624
        %v671 = vunpack.c.h.b16 %v624
        %v672 = vunpack.c.l.b16 %v625
        %v673 = vunpack.c.h.b16 %v625
        %v674 = vunpack.c.l.b16 %v626
        %v675 = vunpack.c.h.b16 %v626
        %v676 = vunpack.c.l.b16 %v627
        %v677 = vunpack.c.h.b16 %v627
        %v678 = vunpack.c.l.b16 %v628
        %v679 = vunpack.c.h.b16 %v628
        %v680 = vunpack.c.l.b16 %v629
        %v681 = vunpack.c.h.b16 %v629
        %v682 = vunpack.c.l.b16 %v630
        %v683 = vunpack.c.h.b16 %v630
        %v684 = vunpack.c.l.b16 %v631
        %v685 = vunpack.c.h.b16 %v631
        %v686 = vunpack.c.l.b16 %v632
        %v687 = vunpack.c.h.b16 %v632
        %v688 = vunpack.c.l.b16 %v633
        %v689 = vunpack.c.h.b16 %v633
        %v690 = vunpack.c.l.b16 %v634
        %v691 = vunpack.c.h.b16 %v634
        %v692 = vunpack.c.l.b16 %v635
        %v693 = vunpack.c.h.b16 %v635
        %v694 = vunpack.c.l.b16 %v636
        %v695 = vunpack.c.h.b16 %v636
        %v696 = vunpack.c.l.b16 %v637
        %v697 = vunpack.c.h.b16 %v637
        %v698 = vunpack.c.l.b16 %v638
        %v699 = vunpack.c.h.b16 %v638
        %v700 = vunpack.c.l.b16 %v639
        %v701 = vunpack.c.h.b16 %v639
        %v702 = vpack.c.b16 %v672, %v670
        %v703 = vpack.c.b16 %v673, %v671
        %v704 = vpack.c.b16 %v676, %v674
        %v705 = vpack.c.b16 %v677, %v675
        %v706 = vpack.c.b16 %v680, %v678
        %v707 = vpack.c.b16 %v681, %v679
        %v708 = vpack.c.b16 %v684, %v682
        %v709 = vpack.c.b16 %v685, %v683
        %v710 = vpack.c.b16 %v688, %v686
        %v711 = vpack.c.b16 %v689, %v687
        %v712 = vpack.c.b16 %v692, %v690
        %v713 = vpack.c.b16 %v693, %v691
        %v714 = vpack.c.b16 %v696, %v694
        %v715 = vpack.c.b16 %v697, %v695
        %v716 = vpack.c.b16 %v700, %v698
        %v717 = vpack.c.b16 %v701, %v699
        %734 = vmatprep.subr.bf16.mxu0 %v703
        %735 = vmatpush1.bf16.msra.mxu0 %v702
        %736 = vmatprep.subr.bf16.mxu0 %v705
        %737 = vmatpush1.bf16.msra.mxu0 %v704
        %738 = vmatprep.subr.bf16.mxu0 %v707
        %739 = vmatpush1.bf16.msra.mxu0 %v706
        %740 = vmatprep.subr.bf16.mxu0 %v709
        %741 = vmatpush1.bf16.msra.mxu0 %v708
        %742 = vmatprep.subr.bf16.mxu0 %v711
        %743 = vmatpush1.bf16.msra.mxu0 %v710
        %744 = vmatprep.subr.bf16.mxu0 %v713
        %745 = vmatpush1.bf16.msra.mxu0 %v712
        %746 = vmatprep.subr.bf16.mxu0 %v715
        %747 = vmatpush1.bf16.msra.mxu0 %v714
        %748 = vmatprep.subr.bf16.mxu0 %v717
        %749 = vmatpush1.bf16.msra.mxu0 %v716
        %750 = vmatprep.subr.bf16.mxu0 0
        %751 = vmatpush1.bf16.msra.mxu0 0
        %752 = vmatprep.subr.bf16.mxu0 0
        %753 = vmatpush1.bf16.msra.mxu0 0
        %754 = vmatprep.subr.bf16.mxu0 0
        %755 = vmatpush1.bf16.msra.mxu0 0
        %756 = vmatprep.subr.bf16.mxu0 0
        %757 = vmatpush1.bf16.msra.mxu0 0
        %758 = vmatprep.subr.bf16.mxu0 0
        %759 = vmatpush1.bf16.msra.mxu0 0
        %760 = vmatprep.subr.bf16.mxu0 0
        %761 = vmatpush1.bf16.msra.mxu0 0
        %762 = vmatprep.subr.bf16.mxu0 0
        %763 = vmatpush1.bf16.msra.mxu0 0
        %764 = vmatprep.subr.bf16.mxu0 0
        %765 = vmatpush1.bf16.msra.mxu0 0
        %766 = vmatprep.mubr.bf16.mxu0 0
        %767 = vmatmul.mubr.bf16.gmra.mrb[0].mxu0 %v642
        %v768 = vpop.f32.mrb[0].mxu0
        %v769 = vadd.f32 %v647, %v768
        %v770 = vpop.f32.mrb[0].mxu0
        %v771 = vadd.f32 %v651, %v770
        %v772 = vpop.f32.mrb[0].mxu0
        %v773 = vadd.f32 %v647, %v772
        %v774 = vpop.f32.mrb[0].mxu0
        %v775 = vadd.f32 %v651, %v774
        %776 = vdwg.mxu0
        %v777 = vxor.u32 %v769, 2147483648
        %v778 = vxor.u32 %v773, 2147483648
        %v779 = vmul.f32 %v777, 1.442695
        %v780 = vpow.pop %v779
        %v781 = vmul.f32 %v778, 1.442695
        %v782 = vpow.pop %v781
        %v783 = vadd.f32 %v780, 1.0
        %v784 = vadd.f32 %v782, 1.0
        %v785 = vrcp.pop %v783
        %v786 = vmul.f32 1.0, %v785
        %v787 = vrcp.pop %v784
        %v788 = vmul.f32 1.0, %v787
        %v789 = vmax.f32 %v771, 0.0
        %v790 = vmax.f32 %v775, 0.0
        %v791 = vsub.f32 %v789, %v621
        %v792 = vsub.f32 %v790, %v622
        %v793 = vmul.f32 %v786, %v791
        %v794 = vmul.f32 %v788, %v792
        %v795 = vadd.f32 %v621, %v793
        %v796 = vadd.f32 %v622, %v794
        %v797 = vpack.c.bf16 %v796, %v795
        %v798 = vld [vmem:[#allocation7] sm:$0xf]
        %v799 = vld [vmem:[#allocation7 + $0x4] sm:$0xf]
        %v800 = vld [vmem:[#allocation7 + $0x8] sm:$0xf]
        %v801 = vld [vmem:[#allocation7 + $0xc] sm:$0xf]
        %v802 = vld [vmem:[#allocation7 + $0x10] sm:$0xf]
        %v803 = vld [vmem:[#allocation7 + $0x14] sm:$0xf]
        %v804 = vld [vmem:[#allocation7 + $0x18] sm:$0xf]
        %v805 = vld [vmem:[#allocation7 + $0x1c] sm:$0xf]
        %v806 = vld [vmem:[#allocation7 + $0x20] sm:$0xf]
        %v807 = vld [vmem:[#allocation7 + $0x24] sm:$0xf]
        %v808 = vld [vmem:[#allocation7 + $0x28] sm:$0xf]
        %v809 = vld [vmem:[#allocation7 + $0x2c] sm:$0xf]
        %v810 = vld [vmem:[#allocation7 + $0x30] sm:$0xf]
        %v811 = vld [vmem:[#allocation7 + $0x34] sm:$0xf]
        %v812 = vld [vmem:[#allocation7 + $0x38] sm:$0xf]
        %v813 = vld [vmem:[#allocation7 + $0x3c] sm:$0xf]
        %v814 = vld [vmem:[%s4] sm:$0x1]
        %v816 = vlaneseq
        %v817 = vshrl.u32 %v816, 7
        %v818 = vsub.s32 0, %v817
        %v819 = vrot.slane %v814, %v818
        %v837 = vunpack.c.l.b16 %v798
        %v838 = vunpack.c.l.b16 %v799
        %v839 = vunpack.c.l.b16 %v800
        %v840 = vunpack.c.l.b16 %v801
        %v841 = vunpack.c.l.b16 %v802
        %v842 = vunpack.c.l.b16 %v803
        %v843 = vunpack.c.l.b16 %v804
        %v844 = vunpack.c.l.b16 %v805
        %v845 = vunpack.c.l.b16 %v806
        %v846 = vunpack.c.l.b16 %v807
        %v847 = vunpack.c.l.b16 %v808
        %v848 = vunpack.c.l.b16 %v809
        %v849 = vunpack.c.l.b16 %v810
        %v850 = vunpack.c.l.b16 %v811
        %v851 = vunpack.c.l.b16 %v812
        %v852 = vunpack.c.l.b16 %v813
        %v853 = vpack.c.b16 %v838, %v837
        %v854 = vpack.c.b16 %v840, %v839
        %v855 = vpack.c.b16 %v842, %v841
        %v856 = vpack.c.b16 %v844, %v843
        %v857 = vpack.c.b16 %v846, %v845
        %v858 = vpack.c.b16 %v848, %v847
        %v859 = vpack.c.b16 %v850, %v849
        %v860 = vpack.c.b16 %v852, %v851
        %869 = vmatprep.subr.bf16.mxu0 0
        %870 = vmatpush1.bf16.msra.mxu0 %v853
        %871 = vmatprep.subr.bf16.mxu0 0
        %872 = vmatpush1.bf16.msra.mxu0 %v854
        %873 = vmatprep.subr.bf16.mxu0 0
        %874 = vmatpush1.bf16.msra.mxu0 %v855
        %875 = vmatprep.subr.bf16.mxu0 0
        %876 = vmatpush1.bf16.msra.mxu0 %v856
        %877 = vmatprep.subr.bf16.mxu0 0
        %878 = vmatpush1.bf16.msra.mxu0 %v857
        %879 = vmatprep.subr.bf16.mxu0 0
        %880 = vmatpush1.bf16.msra.mxu0 %v858
        %881 = vmatprep.subr.bf16.mxu0 0
        %882 = vmatpush1.bf16.msra.mxu0 %v859
        %883 = vmatprep.subr.bf16.mxu0 0
        %884 = vmatpush1.bf16.msra.mxu0 %v860
        %885 = vmatprep.subr.bf16.mxu0 0
        %886 = vmatpush1.bf16.msra.mxu0 0
        %887 = vmatprep.subr.bf16.mxu0 0
        %888 = vmatpush1.bf16.msra.mxu0 0
        %889 = vmatprep.subr.bf16.mxu0 0
        %890 = vmatpush1.bf16.msra.mxu0 0
        %891 = vmatprep.subr.bf16.mxu0 0
        %892 = vmatpush1.bf16.msra.mxu0 0
        %893 = vmatprep.subr.bf16.mxu0 0
        %894 = vmatpush1.bf16.msra.mxu0 0
        %895 = vmatprep.subr.bf16.mxu0 0
        %896 = vmatpush1.bf16.msra.mxu0 0
        %897 = vmatprep.subr.bf16.mxu0 0
        %898 = vmatpush1.bf16.msra.mxu0 0
        %899 = vmatprep.subr.bf16.mxu0 0
        %900 = vmatpush1.bf16.msra.mxu0 0
        %901 = vmatprep.mubr.bf16.mxu0 0
        %902 = vmatmul.mubr.bf16.gmra.mrb[0].mxu0 %v797
        %v903 = vpop.f32.mrb[0].mxu0
        %v904 = vadd.f32 %v819, %v903
        %v905 = vpop.f32.mrb[0].mxu0
        %v906 = vpop.f32.mrb[0].mxu0
        %v907 = vadd.f32 %v819, %v906
        %v908 = vpop.f32.mrb[0].mxu0
        %909 = vdwg.mxu0
        %910 = vst [vmem:[%s271] sm:$0xff] %v904
        %911 = vst [vmem:[%s271 + $0x8] sm:$0xff] %v907
        %s912 = sand.u32 %s141, 1
        %s913 = scalar_lea.sflag [#allocation4], %s912
        %s914 = sand.u32 %s141, 1
        %s915 = smul.addr %s914, 16
        %s916 = scalar_lea.vmem [#allocation8], %s915
        // Predicated region
        $region53: #{tpu_custom_call.1} parent=39 // pred_check
          %p917 = pneg %p151
        $region54: #{tpu_custom_call.1} parent=39 // pred_check_branch
          %919 = sbr.rel (%p917) target = $region56
        $region55: #{tpu_custom_call.1} parent=39 // pred_region
          %s920 = smul.u32 2, %s23
          %s922 = ssub.s32 256, 256
          %923 = vsyncadd %s913, %s922
          %s924 = smul.addr %s920, 128
          %s925 = scalar_lea.hbm %s5, %s924
          %s926 = sshll.u32 %s916, 4
          %s927 = int_to_ptr.vmem [resolvable:$true] %s926
          %932 = dma.vmem_to_hbm [thread:$0]  %s927, 256, %s925, %s913, 128, 128, 8
        $region56: #{tpu_custom_call.1} parent=39 // pred_fallthru
          _
      $region40: #{tpu_custom_call.1} parent=5 // pred_fallthru
        _
      %p933 = scmp.le.s32.totalorder 2, %s18
      // Predicated region
      $region57: #{tpu_custom_call.1} parent=5 // pred_check
        %p934 = pneg %p933
      $region58: #{tpu_custom_call.1} parent=5 // pred_check_branch
        %936 = sbr.rel (%p934) target = $region60
      $region59: #{tpu_custom_call.1} parent=5 // pred_region
        %s937 = ssub.s32 %s18, 2
        // Predicated region
        $region61: #{tpu_custom_call.1} parent=59 // pred_check
          %p938 = pneg %p157
        $region62: #{tpu_custom_call.1} parent=59 // pred_check_branch
          %940 = sbr.rel (%p938) target = $region64
        $region63: #{tpu_custom_call.1} parent=59 // pred_region
          %s941 = sand.u32 %s142, 1
          %s942 = scalar_lea.sflag [#allocation4], %s941
          %s943 = sand.u32 %s142, 1
          %s944 = smul.addr %s943, 16
          %s945 = scalar_lea.vmem [#allocation8], %s944
          %946 = dma.done %s942, 256
        $region64: #{tpu_custom_call.1} parent=59 // pred_fallthru
          _
      $region60: #{tpu_custom_call.1} parent=5 // pred_fallthru
        _
    $region6: #{tpu_custom_call.1} parent=1 // loop_footer
      %s22 = sadd.s32 1, %s18
    $region7: #{tpu_custom_call.1} parent=1 // loop_footer_branch
      %17 = sbr.rel target = $region3
    $region8: #{tpu_custom_call.1} parent=1 // loop_exit
      _
    %947 = vsyncpa [#allocation3], 1
    %s948 = scalar_lea.sflag [#allocation3], 1
    %949 = vsyncpa %s948, 1
    %950 = vsyncpa [#allocation6], 1
    %951 = vsyncpa [#allocation4], 1
    %s952 = scalar_lea.sflag [#allocation4], 1
    %953 = vsyncpa %s952, 1

</llo_original>
